<compile_context>
chip_gen: v6e
topology: v6e:2x2x1
jax: 0.10.0
libtpu: 0.0.40
codegen_flags: <defaults>
</compile_context>

<pallas_src>
import functools

import jax
import jax.numpy as jnp
from jax.experimental import pallas as pl
from jax.experimental.pallas import tpu as pltpu

EPS = 1e-5


def _down_block_kernel(x_ref, t_ref, masks_ref,
                       w1_ref, g1_ref, be1_ref,
                       w2_ref, g2_ref, be2_ref,
                       wemb_ref, bemb_ref, bcast_ref, sel_ref,
                       x_out_ref, down_ref, *, deltas, W, n_elems):
    """Activations laid out as (C, N*P): channels on sublanes, batch+pixels on lanes."""
    NP = x_ref.shape[-1]

    def roll_lanes(v, delta):
        # y[..., l] = v[..., (l + delta) mod NP]  (== jnp.roll(v, -delta, axis=-1))
        s = (-delta) % NP
        if s == 0:
            return v
        return pltpu.roll(v, shift=s, axis=v.ndim - 1)   # XLU vrot, no VMEM temps

    masks = masks_ref[...]                               # (9, NP) 0/1 border masks

    def conv3x3(x2d, w_packed):
        # One MXU matmul per conv for the whole batch.
        parts = []
        for k, d in enumerate(deltas):
            tap = roll_lanes(x2d, d)
            if d != 0:                                   # center tap is always valid
                tap = tap * masks[k:k + 1, :]
            parts.append(tap)
        patch = jnp.concatenate(parts, axis=0)           # (9*Cpad, NP), 8-aligned slabs
        return jnp.dot(w_packed, patch, preferred_element_type=jnp.float32)

    def bn_relu(v, g_col, b_col):
        # Training-mode BatchNorm (biased variance), one-pass stats over all lanes.
        inv_n = 1.0 / n_elems
        s1 = jnp.sum(v, axis=1, keepdims=True)           # (Cout, 1)
        s2 = jnp.sum(v * v, axis=1, keepdims=True)       # (Cout, 1)
        mean = s1 * inv_n
        var = jnp.maximum(s2 * inv_n - mean * mean, 0.0)
        scale = g_col * jax.lax.rsqrt(var + EPS)
        shift = b_col - mean * scale
        return jnp.maximum(v * scale + shift, 0.0)

    # ConvBlock: conv1 -> bn1 -> relu -> conv2 -> bn2 -> relu
    h1 = bn_relu(conv3x3(x_ref[...], w1_ref[...]), g1_ref[...], be1_ref[...])
    cpad2 = w2_ref.shape[1] // 9
    if cpad2 > h1.shape[0]:                              # static no-op when Cout % 8 == 0
        h1 = jnp.concatenate(
            [h1, jnp.zeros((cpad2 - h1.shape[0], NP), h1.dtype)], axis=0)
    h2 = bn_relu(conv3x3(h1, w2_ref[...]), g2_ref[...], be2_ref[...])

    # Time-embedding Linear, broadcast to every spatial lane of its own image
    # (== torch .repeat) via a tiny (N, NP) 0/1 broadcast matmul.
    emb_cn = jnp.dot(wemb_ref[...], t_ref[...],
                     preferred_element_type=jnp.float32)          # (Cout, N)
    emb_full = jnp.dot(emb_cn, bcast_ref[...],
                       preferred_element_type=jnp.float32)        # (Cout, NP)
    h4 = h2 + emb_full + bemb_ref[...]
    x_out_ref[...] = h4                                  # single lane-dense store

    # MaxPool2d(2): max with lane-shift 1 (W pairs) and W (H pairs), then a
    # block-diagonal 0/1 selection matmul compacts the (even-h, even-w) lanes of
    # ALL images into one lane-dense (Cout, N*K) = (Cout, 128) store.
    m1 = jnp.maximum(h4, roll_lanes(h4, 1))
    m2 = jnp.maximum(m1, roll_lanes(m1, W))
    down_ref[...] = jnp.dot(m2, sel_ref[...], preferred_element_type=jnp.float32)


def down_block_forward(x_nchw, t_emb, params):
    """x_nchw: (N, Cin, H, W); params in PyTorch layouts. Returns NCHW outputs.

    Conv biases b1/b2 are accepted but unused: training-mode BN exactly cancels
    a constant per-channel bias, so dropping them does not change the output.
    """
    (w1, _b1, g1, be1, w2, _b2, g2, be2, wemb, bemb) = params
    N, Cin, H, W = x_nchw.shape
    Cout = w1.shape[0]
    P = H * W
    NP = N * P
    Hh, Wh = H // 2, W // 2
    K = Hh * Wh
    NK = N * K

    f32 = jnp.float32
    cin_pad = -(-Cin // 8) * 8     # sublane-align each tap slab of the patch
    cout_pad = -(-Cout // 8) * 8

    # Activation packing: (N, Cin, H, W) -> (Cin_pad, N*P).
    x_flat = x_nchw.astype(f32).reshape(N, Cin, P)
    x_flat = jnp.pad(x_flat, ((0, 0), (0, cin_pad - Cin), (0, 0)))
    x_packed = jnp.transpose(x_flat, (1, 0, 2)).reshape(cin_pad, NP)

    def pack_conv_w(w, cpad):
        co, ci = w.shape[0], w.shape[1]
        w = jnp.pad(w.astype(f32), ((0, 0), (0, cpad - ci), (0, 0), (0, 0)))
        # column order = (kh, kw, cin): matches the tap-major patch concatenation
        return jnp.transpose(w, (0, 2, 3, 1)).reshape(co, 9 * cpad)

    w1p = pack_conv_w(w1, cin_pad)
    w2p = pack_conv_w(w2, cout_pad)

    # 3x3 'same' taps: static lane shifts + precomputed 0/1 validity masks.
    # Masks are built from the per-image pixel index, so lane rolls in the
    # batch-packed layout never leak data across the image boundary.
    p = jnp.arange(P)
    hi, wi = p // W, p % W
    deltas, mask_rows = [], []
    for kh in range(3):
        for kw in range(3):
            dh, dw = kh - 1, kw - 1
            deltas.append(dh * W + dw)
            mask_rows.append((hi + dh >= 0) & (hi + dh < H) &
                             (wi + dw >= 0) & (wi + dw < W))
    masks = jnp.tile(jnp.stack(mask_rows, 0).astype(f32), (1, N))     # (9, NP)

    # 0/1 broadcast matrix (N, NP): lane l belongs to image l // P.
    bcast = (jnp.arange(NP)[None, :] // P == jnp.arange(N)[:, None]).astype(f32)

    # Block-diagonal 0/1 pool-selection matrix (NP, NK): output lane
    # j = n*K + hh*Wh + ww picks packed lane n*P + 2*hh*W + 2*ww.
    j = jnp.arange(NK)
    src = (j // K) * P + ((j % K) // Wh) * (2 * W) + ((j % K) % Wh) * 2
    sel = (jnp.arange(NP)[:, None] == src[None, :]).astype(f32)

    kernel = functools.partial(_down_block_kernel, deltas=tuple(deltas), W=W,
                               n_elems=float(NP))
    vmem = pl.BlockSpec(memory_space=pltpu.MemorySpace.VMEM)

    x_out, down = pl.pallas_call(
        kernel,
        out_shape=(jax.ShapeDtypeStruct((Cout, NP), f32),
                   jax.ShapeDtypeStruct((Cout, NK), f32)),
        in_specs=[vmem] * 13,
        out_specs=(vmem, vmem),
    )(x_packed, jnp.transpose(t_emb).astype(f32), masks,
      w1p, g1[:, None].astype(f32), be1[:, None].astype(f32),
      w2p, g2[:, None].astype(f32), be2[:, None].astype(f32),
      wemb.astype(f32), bemb[:, None].astype(f32), bcast, sel)

    # Tiny wrapper-side transposes back to the PyTorch NCHW convention.
    x_out_nchw = jnp.transpose(x_out.reshape(Cout, N, H, W), (1, 0, 2, 3))
    down_nchw = jnp.transpose(down.reshape(Cout, N, Hh, Wh), (1, 0, 2, 3))
    return x_out_nchw, down_nchw


def reference_forward(x_nchw, t_emb, params):
    """Pure-JAX reference matching the PyTorch forward (training-mode BN)."""
    (w1, b1, g1, be1, w2, b2, g2, be2, wemb, bemb) = params
    x = jnp.transpose(x_nchw, (0, 2, 3, 1)).astype(jnp.float32)

    def conv(z, w, b):
        w_hwio = jnp.transpose(w, (2, 3, 1, 0))   # (Cout,Cin,3,3) -> (3,3,Cin,Cout)
        y = jax.lax.conv_general_dilated(
            z, w_hwio, (1, 1), 'SAME',
            dimension_numbers=('NHWC', 'HWIO', 'NHWC'),
            precision=jax.lax.Precision.HIGHEST)
        return y + b

    def bn_relu(z, g, bt):
        mean = jnp.mean(z, axis=(0, 1, 2), keepdims=True)
        var = jnp.mean((z - mean) ** 2, axis=(0, 1, 2), keepdims=True)
        return jax.nn.relu((z - mean) * jax.lax.rsqrt(var + EPS) * g + bt)

    h = bn_relu(conv(x, w1, b1), g1, be1)
    h = bn_relu(conv(h, w2, b2), g2, be2)
    emb = t_emb.astype(jnp.float32) @ wemb.T + bemb
    h = h + emb[:, None, None, :]
    down = jax.lax.reduce_window(h, -jnp.inf, jax.lax.max,
                                 (1, 2, 2, 1), (1, 2, 2, 1), 'VALID')
    return jnp.transpose(h, (0, 3, 1, 2)), jnp.transpose(down, (0, 3, 1, 2))


if __name__ == "__main__":
    N, Cin, Cout, E, H, W = 2, 4, 8, 16, 16, 16

    key = jax.random.PRNGKey(0)
    keys = jax.random.split(key, 12)
    x = jax.random.normal(keys[0], (N, Cin, H, W), jnp.float32)     # NCHW like PyTorch
    t_emb = jax.random.normal(keys[1], (N, E), jnp.float32)

    # Parameters in PyTorch layouts: Conv2d (Cout,Cin,3,3), Linear (out,in).
    w1 = 0.1 * jax.random.normal(keys[2], (Cout, Cin, 3, 3), jnp.float32)
    b1 = 0.1 * jax.random.normal(keys[3], (Cout,), jnp.float32)
    g1 = 1.0 + 0.1 * jax.random.normal(keys[4], (Cout,), jnp.float32)
    be1 = 0.1 * jax.random.normal(keys[5], (Cout,), jnp.float32)
    w2 = 0.1 * jax.random.normal(keys[6], (Cout, Cout, 3, 3), jnp.float32)
    b2 = 0.1 * jax.random.normal(keys[7], (Cout,), jnp.float32)
    g2 = 1.0 + 0.1 * jax.random.normal(keys[8], (Cout,), jnp.float32)
    be2 = 0.1 * jax.random.normal(keys[9], (Cout,), jnp.float32)
    wemb = 0.1 * jax.random.normal(keys[10], (Cout, E), jnp.float32)
    bemb = 0.1 * jax.random.normal(keys[11], (Cout,), jnp.float32)
    params = (w1, b1, g1, be1, w2, b2, g2, be2, wemb, bemb)

    x_out, down = jax.block_until_ready(down_block_forward(x, t_emb, params))
    x_exp, down_exp = reference_forward(x, t_emb, params)

    assert x_out.shape == (N, Cout, H, W)
    assert down.shape == (N, Cout, H // 2, W // 2)
    assert jnp.allclose(x_out, x_exp, atol=2e-3, rtol=2e-3), \
        float(jnp.max(jnp.abs(x_out - x_exp)))
    assert jnp.allclose(down, down_exp, atol=2e-3, rtol=2e-3), \
        float(jnp.max(jnp.abs(down - down_exp)))
    print("KERNEL_OK")
</pallas_src>

<mosaic_0001>
module attributes {stable_mosaic.version = 11 : i64} {
  func.func @_down_block_kernel(%arg0: memref<8x512xf32, #tpu.memory_space<vmem>>, %arg1: memref<16x2xf32, #tpu.memory_space<vmem>>, %arg2: memref<9x512xf32, #tpu.memory_space<vmem>>, %arg3: memref<8x72xf32, #tpu.memory_space<vmem>>, %arg4: memref<8x1xf32, #tpu.memory_space<vmem>>, %arg5: memref<8x1xf32, #tpu.memory_space<vmem>>, %arg6: memref<8x72xf32, #tpu.memory_space<vmem>>, %arg7: memref<8x1xf32, #tpu.memory_space<vmem>>, %arg8: memref<8x1xf32, #tpu.memory_space<vmem>>, %arg9: memref<8x16xf32, #tpu.memory_space<vmem>>, %arg10: memref<8x1xf32, #tpu.memory_space<vmem>>, %arg11: memref<2x512xf32, #tpu.memory_space<vmem>>, %arg12: memref<512x128xf32, #tpu.memory_space<vmem>>, %arg13: memref<8x512xf32, #tpu.memory_space<vmem>>, %arg14: memref<8x128xf32, #tpu.memory_space<vmem>>) attributes {dimension_semantics = [], scalar_prefetch = 0 : i64, scratch_operands = 0 : i64, tpu.core_type = #tpu.core_type<tc>} {
    %c0 = arith.constant 0 : index
    %c0_0 = arith.constant 0 : index
    %0 = vector.load %arg2[%c0, %c0_0] : memref<9x512xf32, #tpu.memory_space<vmem>>, vector<9x512xf32>
    %c0_1 = arith.constant 0 : index
    %c0_2 = arith.constant 0 : index
    %1 = vector.load %arg0[%c0_1, %c0_2] : memref<8x512xf32, #tpu.memory_space<vmem>>, vector<8x512xf32>
    %c0_3 = arith.constant 0 : index
    %c0_4 = arith.constant 0 : index
    %2 = vector.load %arg3[%c0_3, %c0_4] : memref<8x72xf32, #tpu.memory_space<vmem>>, vector<8x72xf32>
    %c17_i32 = arith.constant 17 : i32
    %3 = tpu.dynamic_rotate %1 by %c17_i32 dim 1 : vector<8x512xf32>, i32 -> vector<8x512xf32>
    %4 = vector.extract_strided_slice %0 {offsets = [0, 0], sizes = [1, 512], strides = [1, 1]} : vector<9x512xf32> to vector<1x512xf32>
    %5 = vector.broadcast %4 : vector<1x512xf32> to vector<8x512xf32>
    %6 = arith.mulf %3, %5 : vector<8x512xf32>
    %c16_i32 = arith.constant 16 : i32
    %7 = tpu.dynamic_rotate %1 by %c16_i32 dim 1 : vector<8x512xf32>, i32 -> vector<8x512xf32>
    %8 = vector.extract_strided_slice %0 {offsets = [1, 0], sizes = [1, 512], strides = [1, 1]} : vector<9x512xf32> to vector<1x512xf32>
    %9 = vector.broadcast %8 : vector<1x512xf32> to vector<8x512xf32>
    %10 = arith.mulf %7, %9 : vector<8x512xf32>
    %c15_i32 = arith.constant 15 : i32
    %11 = tpu.dynamic_rotate %1 by %c15_i32 dim 1 : vector<8x512xf32>, i32 -> vector<8x512xf32>
    %12 = vector.extract_strided_slice %0 {offsets = [2, 0], sizes = [1, 512], strides = [1, 1]} : vector<9x512xf32> to vector<1x512xf32>
    %13 = vector.broadcast %12 : vector<1x512xf32> to vector<8x512xf32>
    %14 = arith.mulf %11, %13 : vector<8x512xf32>
    %c1_i32 = arith.constant 1 : i32
    %15 = tpu.dynamic_rotate %1 by %c1_i32 dim 1 : vector<8x512xf32>, i32 -> vector<8x512xf32>
    %16 = vector.extract_strided_slice %0 {offsets = [3, 0], sizes = [1, 512], strides = [1, 1]} : vector<9x512xf32> to vector<1x512xf32>
    %17 = vector.broadcast %16 : vector<1x512xf32> to vector<8x512xf32>
    %18 = arith.mulf %15, %17 : vector<8x512xf32>
    %c511_i32 = arith.constant 511 : i32
    %19 = tpu.dynamic_rotate %1 by %c511_i32 dim 1 : vector<8x512xf32>, i32 -> vector<8x512xf32>
    %20 = vector.extract_strided_slice %0 {offsets = [5, 0], sizes = [1, 512], strides = [1, 1]} : vector<9x512xf32> to vector<1x512xf32>
    %21 = vector.broadcast %20 : vector<1x512xf32> to vector<8x512xf32>
    %22 = arith.mulf %19, %21 : vector<8x512xf32>
    %c497_i32 = arith.constant 497 : i32
    %23 = tpu.dynamic_rotate %1 by %c497_i32 dim 1 : vector<8x512xf32>, i32 -> vector<8x512xf32>
    %24 = vector.extract_strided_slice %0 {offsets = [6, 0], sizes = [1, 512], strides = [1, 1]} : vector<9x512xf32> to vector<1x512xf32>
    %25 = vector.broadcast %24 : vector<1x512xf32> to vector<8x512xf32>
    %26 = arith.mulf %23, %25 : vector<8x512xf32>
    %c496_i32 = arith.constant 496 : i32
    %27 = tpu.dynamic_rotate %1 by %c496_i32 dim 1 : vector<8x512xf32>, i32 -> vector<8x512xf32>
    %28 = vector.extract_strided_slice %0 {offsets = [7, 0], sizes = [1, 512], strides = [1, 1]} : vector<9x512xf32> to vector<1x512xf32>
    %29 = vector.broadcast %28 : vector<1x512xf32> to vector<8x512xf32>
    %30 = arith.mulf %27, %29 : vector<8x512xf32>
    %c495_i32 = arith.constant 495 : i32
    %31 = tpu.dynamic_rotate %1 by %c495_i32 dim 1 : vector<8x512xf32>, i32 -> vector<8x512xf32>
    %32 = vector.extract_strided_slice %0 {offsets = [8, 0], sizes = [1, 512], strides = [1, 1]} : vector<9x512xf32> to vector<1x512xf32>
    %33 = vector.broadcast %32 : vector<1x512xf32> to vector<8x512xf32>
    %34 = arith.mulf %31, %33 : vector<8x512xf32>
    %35 = tpu.concatenate %6, %10, %14, %18, %1, %22, %26, %30, %34 in 0 : vector<8x512xf32>, vector<8x512xf32>, vector<8x512xf32>, vector<8x512xf32>, vector<8x512xf32>, vector<8x512xf32>, vector<8x512xf32>, vector<8x512xf32>, vector<8x512xf32> -> vector<72x512xf32>
    %cst = arith.constant dense<0.000000e+00> : vector<8x512xf32>
    %36 = tpu.matmul %2, %35, %cst {dimension_numbers = #tpu.dot_dimension_numbers<[1], [0], [0], [1], [0, 0, 1, 1], [], []>} : vector<8x72xf32>, vector<72x512xf32>, vector<8x512xf32> -> vector<8x512xf32>
    %c0_5 = arith.constant 0 : index
    %c0_6 = arith.constant 0 : index
    %37 = vector.load %arg4[%c0_5, %c0_6] : memref<8x1xf32, #tpu.memory_space<vmem>>, vector<8x1xf32>
    %c0_7 = arith.constant 0 : index
    %c0_8 = arith.constant 0 : index
    %38 = vector.load %arg5[%c0_7, %c0_8] : memref<8x1xf32, #tpu.memory_space<vmem>>, vector<8x1xf32>
    %cst_9 = arith.constant dense<0.000000e+00> : vector<8xf32>
    %39 = vector.multi_reduction <add>, %36, %cst_9 [1] : vector<8x512xf32> to vector<8xf32>
    %40 = vector.shape_cast %39 : vector<8xf32> to vector<8x1xf32>
    %41 = arith.mulf %36, %36 : vector<8x512xf32>
    %cst_10 = arith.constant dense<0.000000e+00> : vector<8xf32>
    %42 = vector.multi_reduction <add>, %41, %cst_10 [1] : vector<8x512xf32> to vector<8xf32>
    %43 = vector.shape_cast %42 : vector<8xf32> to vector<8x1xf32>
    %cst_11 = arith.constant 0.001953125 : f32
    %44 = vector.broadcast %cst_11 : f32 to vector<8x1xf32>
    %45 = arith.mulf %40, %44 : vector<8x1xf32>
    %cst_12 = arith.constant 0.001953125 : f32
    %46 = vector.broadcast %cst_12 : f32 to vector<8x1xf32>
    %47 = arith.mulf %43, %46 : vector<8x1xf32>
    %48 = arith.mulf %45, %45 : vector<8x1xf32>
    %49 = arith.subf %47, %48 : vector<8x1xf32>
    %cst_13 = arith.constant 0.000000e+00 : f32
    %50 = vector.broadcast %cst_13 : f32 to vector<8x1xf32>
    %51 = arith.maximumf %49, %50 : vector<8x1xf32>
    %cst_14 = arith.constant 9.99999974E-6 : f32
    %52 = vector.broadcast %cst_14 : f32 to vector<8x1xf32>
    %53 = arith.addf %51, %52 : vector<8x1xf32>
    %54 = math.rsqrt %53 : vector<8x1xf32>
    %55 = arith.mulf %37, %54 : vector<8x1xf32>
    %56 = arith.mulf %45, %55 : vector<8x1xf32>
    %57 = arith.subf %38, %56 : vector<8x1xf32>
    %58 = vector.broadcast %55 : vector<8x1xf32> to vector<8x512xf32>
    %59 = arith.mulf %36, %58 : vector<8x512xf32>
    %60 = vector.broadcast %57 : vector<8x1xf32> to vector<8x512xf32>
    %61 = arith.addf %59, %60 : vector<8x512xf32>
    %cst_15 = arith.constant 0.000000e+00 : f32
    %62 = vector.broadcast %cst_15 : f32 to vector<8x512xf32>
    %63 = arith.maximumf %61, %62 : vector<8x512xf32>
    %c0_16 = arith.constant 0 : index
    %c0_17 = arith.constant 0 : index
    %64 = vector.load %arg6[%c0_16, %c0_17] : memref<8x72xf32, #tpu.memory_space<vmem>>, vector<8x72xf32>
    %c17_i32_18 = arith.constant 17 : i32
    %65 = tpu.dynamic_rotate %63 by %c17_i32_18 dim 1 : vector<8x512xf32>, i32 -> vector<8x512xf32>
    %66 = vector.extract_strided_slice %0 {offsets = [0, 0], sizes = [1, 512], strides = [1, 1]} : vector<9x512xf32> to vector<1x512xf32>
    %67 = vector.broadcast %66 : vector<1x512xf32> to vector<8x512xf32>
    %68 = arith.mulf %65, %67 : vector<8x512xf32>
    %c16_i32_19 = arith.constant 16 : i32
    %69 = tpu.dynamic_rotate %63 by %c16_i32_19 dim 1 : vector<8x512xf32>, i32 -> vector<8x512xf32>
    %70 = vector.extract_strided_slice %0 {offsets = [1, 0], sizes = [1, 512], strides = [1, 1]} : vector<9x512xf32> to vector<1x512xf32>
    %71 = vector.broadcast %70 : vector<1x512xf32> to vector<8x512xf32>
    %72 = arith.mulf %69, %71 : vector<8x512xf32>
    %c15_i32_20 = arith.constant 15 : i32
    %73 = tpu.dynamic_rotate %63 by %c15_i32_20 dim 1 : vector<8x512xf32>, i32 -> vector<8x512xf32>
    %74 = vector.extract_strided_slice %0 {offsets = [2, 0], sizes = [1, 512], strides = [1, 1]} : vector<9x512xf32> to vector<1x512xf32>
    %75 = vector.broadcast %74 : vector<1x512xf32> to vector<8x512xf32>
    %76 = arith.mulf %73, %75 : vector<8x512xf32>
    %c1_i32_21 = arith.constant 1 : i32
    %77 = tpu.dynamic_rotate %63 by %c1_i32_21 dim 1 : vector<8x512xf32>, i32 -> vector<8x512xf32>
    %78 = vector.extract_strided_slice %0 {offsets = [3, 0], sizes = [1, 512], strides = [1, 1]} : vector<9x512xf32> to vector<1x512xf32>
    %79 = vector.broadcast %78 : vector<1x512xf32> to vector<8x512xf32>
    %80 = arith.mulf %77, %79 : vector<8x512xf32>
    %c511_i32_22 = arith.constant 511 : i32
    %81 = tpu.dynamic_rotate %63 by %c511_i32_22 dim 1 : vector<8x512xf32>, i32 -> vector<8x512xf32>
    %82 = vector.extract_strided_slice %0 {offsets = [5, 0], sizes = [1, 512], strides = [1, 1]} : vector<9x512xf32> to vector<1x512xf32>
    %83 = vector.broadcast %82 : vector<1x512xf32> to vector<8x512xf32>
    %84 = arith.mulf %81, %83 : vector<8x512xf32>
    %c497_i32_23 = arith.constant 497 : i32
    %85 = tpu.dynamic_rotate %63 by %c497_i32_23 dim 1 : vector<8x512xf32>, i32 -> vector<8x512xf32>
    %86 = vector.extract_strided_slice %0 {offsets = [6, 0], sizes = [1, 512], strides = [1, 1]} : vector<9x512xf32> to vector<1x512xf32>
    %87 = vector.broadcast %86 : vector<1x512xf32> to vector<8x512xf32>
    %88 = arith.mulf %85, %87 : vector<8x512xf32>
    %c496_i32_24 = arith.constant 496 : i32
    %89 = tpu.dynamic_rotate %63 by %c496_i32_24 dim 1 : vector<8x512xf32>, i32 -> vector<8x512xf32>
    %90 = vector.extract_strided_slice %0 {offsets = [7, 0], sizes = [1, 512], strides = [1, 1]} : vector<9x512xf32> to vector<1x512xf32>
    %91 = vector.broadcast %90 : vector<1x512xf32> to vector<8x512xf32>
    %92 = arith.mulf %89, %91 : vector<8x512xf32>
    %c495_i32_25 = arith.constant 495 : i32
    %93 = tpu.dynamic_rotate %63 by %c495_i32_25 dim 1 : vector<8x512xf32>, i32 -> vector<8x512xf32>
    %94 = vector.extract_strided_slice %0 {offsets = [8, 0], sizes = [1, 512], strides = [1, 1]} : vector<9x512xf32> to vector<1x512xf32>
    %95 = vector.broadcast %94 : vector<1x512xf32> to vector<8x512xf32>
    %96 = arith.mulf %93, %95 : vector<8x512xf32>
    %97 = tpu.concatenate %68, %72, %76, %80, %63, %84, %88, %92, %96 in 0 : vector<8x512xf32>, vector<8x512xf32>, vector<8x512xf32>, vector<8x512xf32>, vector<8x512xf32>, vector<8x512xf32>, vector<8x512xf32>, vector<8x512xf32>, vector<8x512xf32> -> vector<72x512xf32>
    %cst_26 = arith.constant dense<0.000000e+00> : vector<8x512xf32>
    %98 = tpu.matmul %64, %97, %cst_26 {dimension_numbers = #tpu.dot_dimension_numbers<[1], [0], [0], [1], [0, 0, 1, 1], [], []>} : vector<8x72xf32>, vector<72x512xf32>, vector<8x512xf32> -> vector<8x512xf32>
    %c0_27 = arith.constant 0 : index
    %c0_28 = arith.constant 0 : index
    %99 = vector.load %arg7[%c0_27, %c0_28] : memref<8x1xf32, #tpu.memory_space<vmem>>, vector<8x1xf32>
    %c0_29 = arith.constant 0 : index
    %c0_30 = arith.constant 0 : index
    %100 = vector.load %arg8[%c0_29, %c0_30] : memref<8x1xf32, #tpu.memory_space<vmem>>, vector<8x1xf32>
    %cst_31 = arith.constant dense<0.000000e+00> : vector<8xf32>
    %101 = vector.multi_reduction <add>, %98, %cst_31 [1] : vector<8x512xf32> to vector<8xf32>
    %102 = vector.shape_cast %101 : vector<8xf32> to vector<8x1xf32>
    %103 = arith.mulf %98, %98 : vector<8x512xf32>
    %cst_32 = arith.constant dense<0.000000e+00> : vector<8xf32>
    %104 = vector.multi_reduction <add>, %103, %cst_32 [1] : vector<8x512xf32> to vector<8xf32>
    %105 = vector.shape_cast %104 : vector<8xf32> to vector<8x1xf32>
    %cst_33 = arith.constant 0.001953125 : f32
    %106 = vector.broadcast %cst_33 : f32 to vector<8x1xf32>
    %107 = arith.mulf %102, %106 : vector<8x1xf32>
    %cst_34 = arith.constant 0.001953125 : f32
    %108 = vector.broadcast %cst_34 : f32 to vector<8x1xf32>
    %109 = arith.mulf %105, %108 : vector<8x1xf32>
    %110 = arith.mulf %107, %107 : vector<8x1xf32>
    %111 = arith.subf %109, %110 : vector<8x1xf32>
    %cst_35 = arith.constant 0.000000e+00 : f32
    %112 = vector.broadcast %cst_35 : f32 to vector<8x1xf32>
    %113 = arith.maximumf %111, %112 : vector<8x1xf32>
    %cst_36 = arith.constant 9.99999974E-6 : f32
    %114 = vector.broadcast %cst_36 : f32 to vector<8x1xf32>
    %115 = arith.addf %113, %114 : vector<8x1xf32>
    %116 = math.rsqrt %115 : vector<8x1xf32>
    %117 = arith.mulf %99, %116 : vector<8x1xf32>
    %118 = arith.mulf %107, %117 : vector<8x1xf32>
    %119 = arith.subf %100, %118 : vector<8x1xf32>
    %120 = vector.broadcast %117 : vector<8x1xf32> to vector<8x512xf32>
    %121 = arith.mulf %98, %120 : vector<8x512xf32>
    %122 = vector.broadcast %119 : vector<8x1xf32> to vector<8x512xf32>
    %123 = arith.addf %121, %122 : vector<8x512xf32>
    %cst_37 = arith.constant 0.000000e+00 : f32
    %124 = vector.broadcast %cst_37 : f32 to vector<8x512xf32>
    %125 = arith.maximumf %123, %124 : vector<8x512xf32>
    %c0_38 = arith.constant 0 : index
    %c0_39 = arith.constant 0 : index
    %126 = vector.load %arg9[%c0_38, %c0_39] : memref<8x16xf32, #tpu.memory_space<vmem>>, vector<8x16xf32>
    %c0_40 = arith.constant 0 : index
    %c0_41 = arith.constant 0 : index
    %127 = vector.load %arg1[%c0_40, %c0_41] : memref<16x2xf32, #tpu.memory_space<vmem>>, vector<16x2xf32>
    %cst_42 = arith.constant dense<0.000000e+00> : vector<8x2xf32>
    %128 = tpu.matmul %126, %127, %cst_42 {dimension_numbers = #tpu.dot_dimension_numbers<[1], [0], [0], [1], [0, 0, 1, 1], [], []>} : vector<8x16xf32>, vector<16x2xf32>, vector<8x2xf32> -> vector<8x2xf32>
    %c0_43 = arith.constant 0 : index
    %c0_44 = arith.constant 0 : index
    %129 = vector.load %arg11[%c0_43, %c0_44] : memref<2x512xf32, #tpu.memory_space<vmem>>, vector<2x512xf32>
    %cst_45 = arith.constant dense<0.000000e+00> : vector<8x512xf32>
    %130 = tpu.matmul %128, %129, %cst_45 {dimension_numbers = #tpu.dot_dimension_numbers<[1], [0], [0], [1], [0, 0, 1, 1], [], []>} : vector<8x2xf32>, vector<2x512xf32>, vector<8x512xf32> -> vector<8x512xf32>
    %131 = arith.addf %125, %130 : vector<8x512xf32>
    %c0_46 = arith.constant 0 : index
    %c0_47 = arith.constant 0 : index
    %132 = vector.load %arg10[%c0_46, %c0_47] : memref<8x1xf32, #tpu.memory_space<vmem>>, vector<8x1xf32>
    %133 = vector.broadcast %132 : vector<8x1xf32> to vector<8x512xf32>
    %134 = arith.addf %131, %133 : vector<8x512xf32>
    %c0_48 = arith.constant 0 : index
    %c0_49 = arith.constant 0 : index
    %135 = vector.load %arg13[%c0_48, %c0_49] : memref<8x512xf32, #tpu.memory_space<vmem>>, vector<8x512xf32>
    tpu.vector_store %arg13[%c0_48, %c0_49], %134 {strides = array<i32>} : memref<8x512xf32, #tpu.memory_space<vmem>>, vector<8x512xf32>,
    %c511_i32_50 = arith.constant 511 : i32
    %136 = tpu.dynamic_rotate %134 by %c511_i32_50 dim 1 : vector<8x512xf32>, i32 -> vector<8x512xf32>
    %137 = arith.maximumf %134, %136 : vector<8x512xf32>
    %c496_i32_51 = arith.constant 496 : i32
    %138 = tpu.dynamic_rotate %137 by %c496_i32_51 dim 1 : vector<8x512xf32>, i32 -> vector<8x512xf32>
    %139 = arith.maximumf %137, %138 : vector<8x512xf32>
    %c0_52 = arith.constant 0 : index
    %c0_53 = arith.constant 0 : index
    %140 = vector.load %arg12[%c0_52, %c0_53] : memref<512x128xf32, #tpu.memory_space<vmem>>, vector<512x128xf32>
    %cst_54 = arith.constant dense<0.000000e+00> : vector<8x128xf32>
    %141 = tpu.matmul %139, %140, %cst_54 {dimension_numbers = #tpu.dot_dimension_numbers<[1], [0], [0], [1], [0, 0, 1, 1], [], []>} : vector<8x512xf32>, vector<512x128xf32>, vector<8x128xf32> -> vector<8x128xf32>
    %c0_55 = arith.constant 0 : index
    %c0_56 = arith.constant 0 : index
    %142 = vector.load %arg14[%c0_55, %c0_56] : memref<8x128xf32, #tpu.memory_space<vmem>>, vector<8x128xf32>
    tpu.vector_store %arg14[%c0_55, %c0_56], %141 {strides = array<i32>} : memref<8x128xf32, #tpu.memory_space<vmem>>, vector<8x128xf32>,
    return
  }
}

</mosaic_0001>

<llo_original>
// kernel: tpu_custom_call.1
$region0: #{tpu_custom_call.1}
  #allocation0 [shape = 'u32[]', space=smem, size = 0x4, offset = 0x4, fixed_abs, tag = 'smem constant byte address 0x4 - core index']
  #allocation1 [shape = 'u32[144,128]{1,0:T(1,128)}', space=vmem, size = 0x12000, scoped, tag = 'internal scratch']
  %s0 = inlined_call_operand.hbm [shape: f32[8,512], index: 0, kind: input, shape index: {}]
  %s1 = inlined_call_operand.vmem [shape: f32[16,2], index: 1, kind: input, shape index: {}]
  %s2 = inlined_call_operand.vmem [shape: f32[9,512], index: 2, kind: input, shape index: {}]
  %s3 = inlined_call_operand.hbm [shape: f32[8,72], index: 3, kind: input, shape index: {}]
  %s4 = inlined_call_operand.vmem [shape: f32[8,1], index: 4, kind: input, shape index: {}]
  %s5 = inlined_call_operand.vmem [shape: f32[8,1], index: 5, kind: input, shape index: {}]
  %s6 = inlined_call_operand.vmem [shape: f32[8,72], index: 6, kind: input, shape index: {}]
  %s7 = inlined_call_operand.vmem [shape: f32[8,1], index: 7, kind: input, shape index: {}]
  %s8 = inlined_call_operand.vmem [shape: f32[8,1], index: 8, kind: input, shape index: {}]
  %s9 = inlined_call_operand.hbm [shape: f32[8,16], index: 9, kind: input, shape index: {}]
  %s10 = inlined_call_operand.vmem [shape: f32[8,1], index: 10, kind: input, shape index: {}]
  %s11 = inlined_call_operand.vmem [shape: f32[2,512], index: 11, kind: input, shape index: {}]
  %s12 = inlined_call_operand.hbm [shape: f32[512,128], index: 12, kind: input, shape index: {}]
  %s13 = inlined_call_operand.hbm [shape: f32[8,512], index: 13, kind: output, shape index: {0}]
  %s14 = inlined_call_operand.hbm [shape: f32[8,128], index: 14, kind: output, shape index: {1}]
  %15 = xla_tuple %s13, %s14
  %s16 = sld [smem:[#allocation0]]
  $region86: #{tpu_custom_call.1} parent=0
    _
  %s18 = ssub.s32 1, %s16
  %s19 = scalar_select 0, %s18, %s16
  $region1: #{tpu_custom_call.1} parent=0
    #allocation2 [shape = 'u8[16384]{0}', space=vmem, size = 0x4000, scoped, tag = 'input window, operand 0, single buffered']
    #allocation3 [shape = 's32[1]{0}', space=sflag, size = 0x4, scoped, tag = 'scoped memory for tpu_custom_call.1']
    #allocation4 [shape = 's32[1]{0}', space=sflag, size = 0x4, scoped, tag = 'scoped memory for tpu_custom_call.1']
    #allocation5 [shape = 'u8[4096]{0}', space=vmem, size = 0x1000, scoped, tag = 'input window, operand 3, single buffered']
    #allocation6 [shape = 's32[1]{0}', space=sflag, size = 0x4, scoped, tag = 'scoped memory for tpu_custom_call.1']
    #allocation7 [shape = 'u8[4096]{0}', space=vmem, size = 0x1000, scoped, tag = 'input window, operand 9, single buffered']
    #allocation8 [shape = 'u8[262144]{0}', space=vmem, size = 0x40000, scoped, tag = 'input window, operand 12, single buffered']
    #allocation9 [shape = 's32[1]{0}', space=sflag, size = 0x4, scoped, tag = 'scoped memory for tpu_custom_call.1']
    #allocation10 [shape = 'u8[16384]{0}', space=vmem, size = 0x4000, scoped, tag = 'output window, operand 0, single buffered']
    #allocation11 [shape = 'u8[4096]{0}', space=vmem, size = 0x1000, scoped, tag = 'output window, operand 1, single buffered']
    #allocation12 [shape = 's32[1]{0}', space=sflag, size = 0x4, scoped, tag = 'scoped memory for tpu_custom_call.1']
    %20 = vsyncpa [#allocation3], 0
    %21 = vsyncpa [#allocation6], 0
    %22 = vsyncpa [#allocation9], 0
    %23 = vsyncpa [#allocation4], 0
    %24 = vsyncpa [#allocation12], 0
    // Predicated region
    $region2: #{tpu_custom_call.1} parent=1 // pred_check
      _
    $region3: #{tpu_custom_call.1} parent=1 // pred_check_branch
      %26 = sbr.rel (0) target = $region5
    $region4: #{tpu_custom_call.1} parent=1 // pred_region
      %s28 = ssub.s32 512, 512
      %29 = vsyncadd [#allocation3], %s28
      %s31 = sshll.u32 [#allocation2], 4
      %s32 = int_to_ptr.vmem [resolvable:$true] %s31
      %34 = dma.hbm_to_vmem [thread:$0]  %s0, 512, %s32, [#allocation3]
    $region5: #{tpu_custom_call.1} parent=1 // pred_fallthru
      _
    // Predicated region
    $region6: #{tpu_custom_call.1} parent=1 // pred_check
      _
    $region7: #{tpu_custom_call.1} parent=1 // pred_check_branch
      %36 = sbr.rel (0) target = $region9
    $region8: #{tpu_custom_call.1} parent=1 // pred_region
      _
    $region9: #{tpu_custom_call.1} parent=1 // pred_fallthru
      _
    // Predicated region
    $region10: #{tpu_custom_call.1} parent=1 // pred_check
      _
    $region11: #{tpu_custom_call.1} parent=1 // pred_check_branch
      %38 = sbr.rel (0) target = $region13
    $region12: #{tpu_custom_call.1} parent=1 // pred_region
      _
    $region13: #{tpu_custom_call.1} parent=1 // pred_fallthru
      _
    // Predicated region
    $region14: #{tpu_custom_call.1} parent=1 // pred_check
      _
    $region15: #{tpu_custom_call.1} parent=1 // pred_check_branch
      %40 = sbr.rel (0) target = $region17
    $region16: #{tpu_custom_call.1} parent=1 // pred_region
      %s42 = ssub.s32 128, 128
      %43 = vsyncadd [#allocation6], %s42
      %s45 = sshll.u32 [#allocation5], 4
      %s46 = int_to_ptr.vmem [resolvable:$true] %s45
      %48 = dma.hbm_to_vmem [thread:$0]  %s3, 128, %s46, [#allocation6]
    $region17: #{tpu_custom_call.1} parent=1 // pred_fallthru
      _
    // Predicated region
    $region18: #{tpu_custom_call.1} parent=1 // pred_check
      _
    $region19: #{tpu_custom_call.1} parent=1 // pred_check_branch
      %50 = sbr.rel (0) target = $region21
    $region20: #{tpu_custom_call.1} parent=1 // pred_region
      _
    $region21: #{tpu_custom_call.1} parent=1 // pred_fallthru
      _
    // Predicated region
    $region22: #{tpu_custom_call.1} parent=1 // pred_check
      _
    $region23: #{tpu_custom_call.1} parent=1 // pred_check_branch
      %52 = sbr.rel (0) target = $region25
    $region24: #{tpu_custom_call.1} parent=1 // pred_region
      _
    $region25: #{tpu_custom_call.1} parent=1 // pred_fallthru
      _
    // Predicated region
    $region26: #{tpu_custom_call.1} parent=1 // pred_check
      _
    $region27: #{tpu_custom_call.1} parent=1 // pred_check_branch
      %54 = sbr.rel (0) target = $region29
    $region28: #{tpu_custom_call.1} parent=1 // pred_region
      _
    $region29: #{tpu_custom_call.1} parent=1 // pred_fallthru
      _
    // Predicated region
    $region30: #{tpu_custom_call.1} parent=1 // pred_check
      _
    $region31: #{tpu_custom_call.1} parent=1 // pred_check_branch
      %56 = sbr.rel (0) target = $region33
    $region32: #{tpu_custom_call.1} parent=1 // pred_region
      _
    $region33: #{tpu_custom_call.1} parent=1 // pred_fallthru
      _
    // Predicated region
    $region34: #{tpu_custom_call.1} parent=1 // pred_check
      _
    $region35: #{tpu_custom_call.1} parent=1 // pred_check_branch
      %58 = sbr.rel (0) target = $region37
    $region36: #{tpu_custom_call.1} parent=1 // pred_region
      _
    $region37: #{tpu_custom_call.1} parent=1 // pred_fallthru
      _
    // Predicated region
    $region38: #{tpu_custom_call.1} parent=1 // pred_check
      _
    $region39: #{tpu_custom_call.1} parent=1 // pred_check_branch
      %60 = sbr.rel (0) target = $region41
    $region40: #{tpu_custom_call.1} parent=1 // pred_region
      %s62 = ssub.s32 128, 128
      %63 = vsyncadd [#allocation6], %s62
      %s65 = sshll.u32 [#allocation7], 4
      %s66 = int_to_ptr.vmem [resolvable:$true] %s65
      %68 = dma.hbm_to_vmem [thread:$0]  %s9, 128, %s66, [#allocation6]
    $region41: #{tpu_custom_call.1} parent=1 // pred_fallthru
      _
    // Predicated region
    $region42: #{tpu_custom_call.1} parent=1 // pred_check
      _
    $region43: #{tpu_custom_call.1} parent=1 // pred_check_branch
      %70 = sbr.rel (0) target = $region45
    $region44: #{tpu_custom_call.1} parent=1 // pred_region
      _
    $region45: #{tpu_custom_call.1} parent=1 // pred_fallthru
      _
    // Predicated region
    $region46: #{tpu_custom_call.1} parent=1 // pred_check
      _
    $region47: #{tpu_custom_call.1} parent=1 // pred_check_branch
      %72 = sbr.rel (0) target = $region49
    $region48: #{tpu_custom_call.1} parent=1 // pred_region
      _
    $region49: #{tpu_custom_call.1} parent=1 // pred_fallthru
      _
    // Predicated region
    $region50: #{tpu_custom_call.1} parent=1 // pred_check
      _
    $region51: #{tpu_custom_call.1} parent=1 // pred_check_branch
      %74 = sbr.rel (0) target = $region53
    $region52: #{tpu_custom_call.1} parent=1 // pred_region
      %s76 = ssub.s32 8192, 8192
      %77 = vsyncadd [#allocation9], %s76
      %s78 = sshll.u32 [#allocation8], 4
      %s79 = int_to_ptr.vmem [resolvable:$true] %s78
      %84 = dma.hbm_to_vmem [thread:$0]  %s12, 8192, %s79, [#allocation9], 128, 128, 8
    $region53: #{tpu_custom_call.1} parent=1 // pred_fallthru
      _
    // Predicated region
    $region54: #{tpu_custom_call.1} parent=1 // pred_check
      _
    $region55: #{tpu_custom_call.1} parent=1 // pred_check_branch
      %86 = sbr.rel (0) target = $region57
    $region56: #{tpu_custom_call.1} parent=1 // pred_region
      %87 = dma.done [#allocation3], 512
    $region57: #{tpu_custom_call.1} parent=1 // pred_fallthru
      _
    // Predicated region
    $region58: #{tpu_custom_call.1} parent=1 // pred_check
      _
    $region59: #{tpu_custom_call.1} parent=1 // pred_check_branch
      %89 = sbr.rel (0) target = $region61
    $region60: #{tpu_custom_call.1} parent=1 // pred_region
      %90 = dma.done [#allocation6], 128
    $region61: #{tpu_custom_call.1} parent=1 // pred_fallthru
      _
    // Predicated region
    $region62: #{tpu_custom_call.1} parent=1 // pred_check
      _
    $region63: #{tpu_custom_call.1} parent=1 // pred_check_branch
      %92 = sbr.rel (0) target = $region65
    $region64: #{tpu_custom_call.1} parent=1 // pred_region
      %93 = dma.done [#allocation6], 128
    $region65: #{tpu_custom_call.1} parent=1 // pred_fallthru
      _
    // Predicated region
    $region66: #{tpu_custom_call.1} parent=1 // pred_check
      _
    $region67: #{tpu_custom_call.1} parent=1 // pred_check_branch
      %95 = sbr.rel (0) target = $region69
    $region68: #{tpu_custom_call.1} parent=1 // pred_region
      %96 = dma.done [#allocation9], 8192
    $region69: #{tpu_custom_call.1} parent=1 // pred_fallthru
      _
    %v97 = vld [vmem:[%s2] sm:$0xff]
    %v98 = vld [vmem:[%s2 + $0x8] sm:$0xff]
    %v99 = vld [vmem:[%s2 + $0x10] sm:$0xff]
    %v100 = vld [vmem:[%s2 + $0x18] sm:$0xff]
    %v101 = vld [vmem:[%s2 + $0x20] sm:$0x1]
    %v102 = vld [vmem:[%s2 + $0x28] sm:$0x1]
    %v103 = vld [vmem:[%s2 + $0x30] sm:$0x1]
    %v104 = vld [vmem:[%s2 + $0x38] sm:$0x1]
    %v105 = vld [vmem:[#allocation2] sm:$0xff]
    %v106 = vld [vmem:[#allocation2 + $0x8] sm:$0xff]
    %v107 = vld [vmem:[#allocation2 + $0x10] sm:$0xff]
    %v108 = vld [vmem:[#allocation2 + $0x18] sm:$0xff]
    %v109 = vld [vmem:[#allocation5] sm:$0xff]
    %110 = vrot.lane.b32.xlu0 %v105, 17
    %v111 = vpop.permute.xlu0 %110
    %112 = vrot.lane.b32.xlu0 %v106, 17
    %v113 = vpop.permute.xlu0 %112
    %114 = vrot.lane.b32.xlu0 %v107, 17
    %v115 = vpop.permute.xlu0 %114
    %116 = vrot.lane.b32.xlu0 %v108, 17
    %v117 = vpop.permute.xlu0 %116
    %v118 = vlaneseq
    %v119 = vand.u32 %v118, 127
    %vm120 = vcmp.lt.s32.totalorder %v119, 17
    %v121 = vsel %vm120, %v115, %v117
    %v122 = vsel %vm120, %v113, %v115
    %v123 = vsel %vm120, %v111, %v113
    %v124 = vsel %vm120, %v117, %v111
    %v125 = vlaneseq
    %v126 = vshrl.u32 %v125, 7
    %v127 = vsub.s32 0, %v126
    %v128 = vrot.slane %v97, %v127
    %v129 = vlaneseq
    %v130 = vshrl.u32 %v129, 7
    %v131 = vsub.s32 0, %v130
    %v132 = vrot.slane %v98, %v131
    %v133 = vlaneseq
    %v134 = vshrl.u32 %v133, 7
    %v135 = vsub.s32 0, %v134
    %v136 = vrot.slane %v99, %v135
    %v137 = vlaneseq
    %v138 = vshrl.u32 %v137, 7
    %v139 = vsub.s32 0, %v138
    %v140 = vrot.slane %v100, %v139
    %v141 = vmul.f32 %v124, %v128
    %v142 = vmul.f32 %v123, %v132
    %v143 = vmul.f32 %v122, %v136
    %v144 = vmul.f32 %v121, %v140
    %145 = vrot.lane.b32.xlu0 %v105, 16
    %v146 = vpop.permute.xlu0 %145
    %147 = vrot.lane.b32.xlu0 %v106, 16
    %v148 = vpop.permute.xlu0 %147
    %149 = vrot.lane.b32.xlu0 %v107, 16
    %v150 = vpop.permute.xlu0 %149
    %151 = vrot.lane.b32.xlu0 %v108, 16
    %v152 = vpop.permute.xlu0 %151
    %vm153 = vcmp.lt.s32.totalorder %v119, 16
    %v154 = vsel %vm153, %v150, %v152
    %v155 = vsel %vm153, %v148, %v150
    %v156 = vsel %vm153, %v146, %v148
    %v157 = vsel %vm153, %v152, %v146
    %v158 = vlaneseq
    %v159 = vshrl.u32 %v158, 7
    %v160 = vsub.s32 1, %v159
    %v161 = vrot.slane %v97, %v160
    %v162 = vlaneseq
    %v163 = vshrl.u32 %v162, 7
    %v164 = vsub.s32 1, %v163
    %v165 = vrot.slane %v98, %v164
    %v166 = vlaneseq
    %v167 = vshrl.u32 %v166, 7
    %v168 = vsub.s32 1, %v167
    %v169 = vrot.slane %v99, %v168
    %v170 = vlaneseq
    %v171 = vshrl.u32 %v170, 7
    %v172 = vsub.s32 1, %v171
    %v173 = vrot.slane %v100, %v172
    %v174 = vmul.f32 %v157, %v161
    %v175 = vmul.f32 %v156, %v165
    %v176 = vmul.f32 %v155, %v169
    %v177 = vmul.f32 %v154, %v173
    %178 = vrot.lane.b32.xlu0 %v105, 15
    %v179 = vpop.permute.xlu0 %178
    %180 = vrot.lane.b32.xlu0 %v106, 15
    %v181 = vpop.permute.xlu0 %180
    %182 = vrot.lane.b32.xlu0 %v107, 15
    %v183 = vpop.permute.xlu0 %182
    %184 = vrot.lane.b32.xlu0 %v108, 15
    %v185 = vpop.permute.xlu0 %184
    %vm186 = vcmp.lt.s32.totalorder %v119, 15
    %v187 = vsel %vm186, %v183, %v185
    %v188 = vsel %vm186, %v181, %v183
    %v189 = vsel %vm186, %v179, %v181
    %v190 = vsel %vm186, %v185, %v179
    %v191 = vlaneseq
    %v192 = vshrl.u32 %v191, 7
    %v193 = vsub.s32 2, %v192
    %v194 = vrot.slane %v97, %v193
    %v195 = vlaneseq
    %v196 = vshrl.u32 %v195, 7
    %v197 = vsub.s32 2, %v196
    %v198 = vrot.slane %v98, %v197
    %v199 = vlaneseq
    %v200 = vshrl.u32 %v199, 7
    %v201 = vsub.s32 2, %v200
    %v202 = vrot.slane %v99, %v201
    %v203 = vlaneseq
    %v204 = vshrl.u32 %v203, 7
    %v205 = vsub.s32 2, %v204
    %v206 = vrot.slane %v100, %v205
    %v207 = vmul.f32 %v190, %v194
    %v208 = vmul.f32 %v189, %v198
    %v209 = vmul.f32 %v188, %v202
    %v210 = vmul.f32 %v187, %v206
    %211 = vrot.lane.b32.xlu0 %v105, 1
    %v212 = vpop.permute.xlu0 %211
    %213 = vrot.lane.b32.xlu0 %v106, 1
    %v214 = vpop.permute.xlu0 %213
    %215 = vrot.lane.b32.xlu0 %v107, 1
    %v216 = vpop.permute.xlu0 %215
    %217 = vrot.lane.b32.xlu0 %v108, 1
    %v218 = vpop.permute.xlu0 %217
    %vm219 = vcmp.lt.s32.totalorder %v119, 1
    %v220 = vsel %vm219, %v216, %v218
    %v221 = vsel %vm219, %v214, %v216
    %v222 = vsel %vm219, %v212, %v214
    %v223 = vsel %vm219, %v218, %v212
    %v224 = vlaneseq
    %v225 = vshrl.u32 %v224, 7
    %v226 = vsub.s32 3, %v225
    %v227 = vrot.slane %v97, %v226
    %v228 = vlaneseq
    %v229 = vshrl.u32 %v228, 7
    %v230 = vsub.s32 3, %v229
    %v231 = vrot.slane %v98, %v230
    %v232 = vlaneseq
    %v233 = vshrl.u32 %v232, 7
    %v234 = vsub.s32 3, %v233
    %v235 = vrot.slane %v99, %v234
    %v236 = vlaneseq
    %v237 = vshrl.u32 %v236, 7
    %v238 = vsub.s32 3, %v237
    %v239 = vrot.slane %v100, %v238
    %v240 = vmul.f32 %v223, %v227
    %v241 = vmul.f32 %v222, %v231
    %v242 = vmul.f32 %v221, %v235
    %v243 = vmul.f32 %v220, %v239
    %244 = vrot.lane.b32.xlu0 %v105, 127
    %v245 = vpop.permute.xlu0 %244
    %246 = vrot.lane.b32.xlu0 %v106, 127
    %v247 = vpop.permute.xlu0 %246
    %248 = vrot.lane.b32.xlu0 %v107, 127
    %v249 = vpop.permute.xlu0 %248
    %250 = vrot.lane.b32.xlu0 %v108, 127
    %v251 = vpop.permute.xlu0 %250
    %vm252 = vcmp.lt.s32.totalorder %v119, 127
    %v253 = vsel %vm252, %v249, %v251
    %v254 = vsel %vm252, %v247, %v249
    %v255 = vsel %vm252, %v245, %v247
    %v256 = vsel %vm252, %v251, %v245
    %v257 = vlaneseq
    %v258 = vshrl.u32 %v257, 7
    %v259 = vsub.s32 5, %v258
    %v260 = vrot.slane %v97, %v259
    %v261 = vlaneseq
    %v262 = vshrl.u32 %v261, 7
    %v263 = vsub.s32 5, %v262
    %v264 = vrot.slane %v98, %v263
    %v265 = vlaneseq
    %v266 = vshrl.u32 %v265, 7
    %v267 = vsub.s32 5, %v266
    %v268 = vrot.slane %v99, %v267
    %v269 = vlaneseq
    %v270 = vshrl.u32 %v269, 7
    %v271 = vsub.s32 5, %v270
    %v272 = vrot.slane %v100, %v271
    %v273 = vmul.f32 %v255, %v260
    %v274 = vmul.f32 %v254, %v264
    %v275 = vmul.f32 %v253, %v268
    %v276 = vmul.f32 %v256, %v272
    %277 = vrot.lane.b32.xlu0 %v105, 113
    %v278 = vpop.permute.xlu0 %277
    %279 = vrot.lane.b32.xlu0 %v106, 113
    %v280 = vpop.permute.xlu0 %279
    %281 = vrot.lane.b32.xlu0 %v107, 113
    %v282 = vpop.permute.xlu0 %281
    %283 = vrot.lane.b32.xlu0 %v108, 113
    %v284 = vpop.permute.xlu0 %283
    %vm285 = vcmp.lt.s32.totalorder %v119, 113
    %v286 = vsel %vm285, %v282, %v284
    %v287 = vsel %vm285, %v280, %v282
    %v288 = vsel %vm285, %v278, %v280
    %v289 = vsel %vm285, %v284, %v278
    %v290 = vlaneseq
    %v291 = vshrl.u32 %v290, 7
    %v292 = vsub.s32 6, %v291
    %v293 = vrot.slane %v97, %v292
    %v294 = vlaneseq
    %v295 = vshrl.u32 %v294, 7
    %v296 = vsub.s32 6, %v295
    %v297 = vrot.slane %v98, %v296
    %v298 = vlaneseq
    %v299 = vshrl.u32 %v298, 7
    %v300 = vsub.s32 6, %v299
    %v301 = vrot.slane %v99, %v300
    %v302 = vlaneseq
    %v303 = vshrl.u32 %v302, 7
    %v304 = vsub.s32 6, %v303
    %v305 = vrot.slane %v100, %v304
    %v306 = vmul.f32 %v288, %v293
    %v307 = vmul.f32 %v287, %v297
    %v308 = vmul.f32 %v286, %v301
    %v309 = vmul.f32 %v289, %v305
    %310 = vrot.lane.b32.xlu0 %v105, 112
    %v311 = vpop.permute.xlu0 %310
    %312 = vrot.lane.b32.xlu0 %v106, 112
    %v313 = vpop.permute.xlu0 %312
    %314 = vrot.lane.b32.xlu0 %v107, 112
    %v315 = vpop.permute.xlu0 %314
    %316 = vrot.lane.b32.xlu0 %v108, 112
    %v317 = vpop.permute.xlu0 %316
    %vm318 = vcmp.lt.s32.totalorder %v119, 112
    %v319 = vsel %vm318, %v315, %v317
    %v320 = vsel %vm318, %v313, %v315
    %v321 = vsel %vm318, %v311, %v313
    %v322 = vsel %vm318, %v317, %v311
    %v323 = vlaneseq
    %v324 = vshrl.u32 %v323, 7
    %v325 = vsub.s32 7, %v324
    %v326 = vrot.slane %v97, %v325
    %v327 = vlaneseq
    %v328 = vshrl.u32 %v327, 7
    %v329 = vsub.s32 7, %v328
    %v330 = vrot.slane %v98, %v329
    %v331 = vlaneseq
    %v332 = vshrl.u32 %v331, 7
    %v333 = vsub.s32 7, %v332
    %v334 = vrot.slane %v99, %v333
    %v335 = vlaneseq
    %v336 = vshrl.u32 %v335, 7
    %v337 = vsub.s32 7, %v336
    %v338 = vrot.slane %v100, %v337
    %v339 = vmul.f32 %v321, %v326
    %v340 = vmul.f32 %v320, %v330
    %v341 = vmul.f32 %v319, %v334
    %v342 = vmul.f32 %v322, %v338
    %343 = vrot.lane.b32.xlu0 %v105, 111
    %v344 = vpop.permute.xlu0 %343
    %345 = vrot.lane.b32.xlu0 %v106, 111
    %v346 = vpop.permute.xlu0 %345
    %347 = vrot.lane.b32.xlu0 %v107, 111
    %v348 = vpop.permute.xlu0 %347
    %349 = vrot.lane.b32.xlu0 %v108, 111
    %v350 = vpop.permute.xlu0 %349
    %vm351 = vcmp.lt.s32.totalorder %v119, 111
    %v352 = vsel %vm351, %v348, %v350
    %v353 = vsel %vm351, %v346, %v348
    %v354 = vsel %vm351, %v344, %v346
    %v355 = vsel %vm351, %v350, %v344
    %v356 = vlaneseq
    %v357 = vshrl.u32 %v356, 7
    %v358 = vsub.s32 0, %v357
    %v359 = vrot.slane %v101, %v358
    %v360 = vlaneseq
    %v361 = vshrl.u32 %v360, 7
    %v362 = vsub.s32 0, %v361
    %v363 = vrot.slane %v102, %v362
    %v364 = vlaneseq
    %v365 = vshrl.u32 %v364, 7
    %v366 = vsub.s32 0, %v365
    %v367 = vrot.slane %v103, %v366
    %v368 = vlaneseq
    %v369 = vshrl.u32 %v368, 7
    %v370 = vsub.s32 0, %v369
    %v371 = vrot.slane %v104, %v370
    %v372 = vmul.f32 %v354, %v359
    %v373 = vmul.f32 %v353, %v363
    %v374 = vmul.f32 %v352, %v367
    %v375 = vmul.f32 %v355, %v371
    %vm376 = vcmask 588800
    %v378 = vsel %vm376, %v109, 0
    %380 = vmatprep.subr.mxu0 0.0
    %381 = vmatpush1.msra.mxu0 0.0
    %382 = vmatprep.subr.mxu0 0.0
    %383 = vmatpush1.msra.mxu0 0.0
    %384 = vmatprep.subr.mxu0 0.0
    %385 = vmatpush1.msra.mxu0 0.0
    %386 = vmatprep.subr.mxu0 0.0
    %387 = vmatpush1.msra.mxu0 0.0
    %388 = vmatprep.subr.mxu0 0.0
    %389 = vmatpush1.msra.mxu0 0.0
    %390 = vmatprep.subr.mxu0 0.0
    %391 = vmatpush1.msra.mxu0 0.0
    %392 = vmatprep.subr.mxu0 0.0
    %393 = vmatpush1.msra.mxu0 0.0
    %394 = vmatprep.subr.mxu0 %v373
    %395 = vmatpush1.msra.mxu0 %v372
    %396 = vmatprep.subr.mxu0 %v340
    %397 = vmatpush1.msra.mxu0 %v339
    %398 = vmatprep.subr.mxu0 %v307
    %399 = vmatpush1.msra.mxu0 %v306
    %400 = vmatprep.subr.mxu0 %v274
    %401 = vmatpush1.msra.mxu0 %v273
    %402 = vmatprep.subr.mxu0 %v106
    %403 = vmatpush1.msra.mxu0 %v105
    %404 = vmatprep.subr.mxu0 %v241
    %405 = vmatpush1.msra.mxu0 %v240
    %406 = vmatprep.subr.mxu0 %v208
    %407 = vmatpush1.msra.mxu0 %v207
    %408 = vmatprep.subr.mxu0 %v175
    %409 = vmatpush1.msra.mxu0 %v174
    %410 = vmatprep.subr.mxu0 %v142
    %411 = vmatpush1.msra.mxu0 %v141
    %412 = vmatprep.subr.mxu0 0.0
    %413 = vmatpush2.msra.mxu0 0.0
    %414 = vmatprep.subr.mxu0 0.0
    %415 = vmatpush2.msra.mxu0 0.0
    %416 = vmatprep.subr.mxu0 0.0
    %417 = vmatpush2.msra.mxu0 0.0
    %418 = vmatprep.subr.mxu0 0.0
    %419 = vmatpush2.msra.mxu0 0.0
    %420 = vmatprep.subr.mxu0 0.0
    %421 = vmatpush2.msra.mxu0 0.0
    %422 = vmatprep.subr.mxu0 0.0
    %423 = vmatpush2.msra.mxu0 0.0
    %424 = vmatprep.subr.mxu0 0.0
    %425 = vmatpush2.msra.mxu0 0.0
    %426 = vmatprep.subr.mxu0 0.0
    %427 = vmatpush2.msra.mxu0 0.0
    %428 = vmatprep.subr.mxu0 0.0
    %429 = vmatpush2.msra.mxu0 0.0
    %430 = vmatprep.subr.mxu0 0.0
    %431 = vmatpush2.msra.mxu0 0.0
    %432 = vmatprep.subr.mxu0 0.0
    %433 = vmatpush2.msra.mxu0 0.0
    %434 = vmatprep.subr.mxu0 0.0
    %435 = vmatpush2.msra.mxu0 0.0
    %436 = vmatprep.subr.mxu0 0.0
    %437 = vmatpush2.msra.mxu0 0.0
    %438 = vmatprep.subr.mxu0 0.0
    %439 = vmatpush2.msra.mxu0 0.0
    %440 = vmatprep.subr.mxu0 0.0
    %441 = vmatpush2.msra.mxu0 0.0
    %442 = vmatprep.subr.mxu0 0.0
    %443 = vmatpush2.msra.mxu0 0.0
    %444 = vmatprep.mubr.f32.mxu0 0.0
    %445 = vmatmul.mubr.f32.gmra.mxu0 %v378
    %v446 = vpop.f32.mrf.mxu0
    %v447 = vadd.f32 0.0, %v446
    %v448 = vpop.f32.mrf.mxu0
    %v449 = vadd.f32 0.0, %v448
    %450 = vdwg.mxu0
    %451 = vmatprep.subr.mxu0 0.0
    %452 = vmatpush1.msra.mxu0 0.0
    %453 = vmatprep.subr.mxu0 0.0
    %454 = vmatpush1.msra.mxu0 0.0
    %455 = vmatprep.subr.mxu0 0.0
    %456 = vmatpush1.msra.mxu0 0.0
    %457 = vmatprep.subr.mxu0 0.0
    %458 = vmatpush1.msra.mxu0 0.0
    %459 = vmatprep.subr.mxu0 0.0
    %460 = vmatpush1.msra.mxu0 0.0
    %461 = vmatprep.subr.mxu0 0.0
    %462 = vmatpush1.msra.mxu0 0.0
    %463 = vmatprep.subr.mxu0 0.0
    %464 = vmatpush1.msra.mxu0 0.0
    %465 = vmatprep.subr.mxu0 %v375
    %466 = vmatpush1.msra.mxu0 %v374
    %467 = vmatprep.subr.mxu0 %v342
    %468 = vmatpush1.msra.mxu0 %v341
    %469 = vmatprep.subr.mxu0 %v309
    %470 = vmatpush1.msra.mxu0 %v308
    %471 = vmatprep.subr.mxu0 %v276
    %472 = vmatpush1.msra.mxu0 %v275
    %473 = vmatprep.subr.mxu0 %v108
    %474 = vmatpush1.msra.mxu0 %v107
    %475 = vmatprep.subr.mxu0 %v243
    %476 = vmatpush1.msra.mxu0 %v242
    %477 = vmatprep.subr.mxu0 %v210
    %478 = vmatpush1.msra.mxu0 %v209
    %479 = vmatprep.subr.mxu0 %v177
    %480 = vmatpush1.msra.mxu0 %v176
    %481 = vmatprep.subr.mxu0 %v144
    %482 = vmatpush1.msra.mxu0 %v143
    %483 = vmatprep.subr.mxu0 0.0
    %484 = vmatpush2.msra.mxu0 0.0
    %485 = vmatprep.subr.mxu0 0.0
    %486 = vmatpush2.msra.mxu0 0.0
    %487 = vmatprep.subr.mxu0 0.0
    %488 = vmatpush2.msra.mxu0 0.0
    %489 = vmatprep.subr.mxu0 0.0
    %490 = vmatpush2.msra.mxu0 0.0
    %491 = vmatprep.subr.mxu0 0.0
    %492 = vmatpush2.msra.mxu0 0.0
    %493 = vmatprep.subr.mxu0 0.0
    %494 = vmatpush2.msra.mxu0 0.0
    %495 = vmatprep.subr.mxu0 0.0
    %496 = vmatpush2.msra.mxu0 0.0
    %497 = vmatprep.subr.mxu0 0.0
    %498 = vmatpush2.msra.mxu0 0.0
    %499 = vmatprep.subr.mxu0 0.0
    %500 = vmatpush2.msra.mxu0 0.0
    %501 = vmatprep.subr.mxu0 0.0
    %502 = vmatpush2.msra.mxu0 0.0
    %503 = vmatprep.subr.mxu0 0.0
    %504 = vmatpush2.msra.mxu0 0.0
    %505 = vmatprep.subr.mxu0 0.0
    %506 = vmatpush2.msra.mxu0 0.0
    %507 = vmatprep.subr.mxu0 0.0
    %508 = vmatpush2.msra.mxu0 0.0
    %509 = vmatprep.subr.mxu0 0.0
    %510 = vmatpush2.msra.mxu0 0.0
    %511 = vmatprep.subr.mxu0 0.0
    %512 = vmatpush2.msra.mxu0 0.0
    %513 = vmatprep.subr.mxu0 0.0
    %514 = vmatpush2.msra.mxu0 0.0
    %515 = vmatprep.mubr.f32.mxu0 0.0
    %516 = vmatmul.mubr.f32.gmra.mxu0 %v378
    %v517 = vpop.f32.mrf.mxu0
    %v518 = vadd.f32 0.0, %v517
    %v519 = vpop.f32.mrf.mxu0
    %v520 = vadd.f32 0.0, %v519
    %521 = vdwg.mxu0
    %v522 = vld [vmem:[%s4] sm:$0xff]
    %v523 = vld [vmem:[%s5] sm:$0xff]
    %v524 = vadd.f32 %v447, %v449
    %v525 = vadd.f32 %v524, %v518
    %v526 = vadd.f32 %v525, %v520
    %527 = vadd.xlane.f32.xlu0 %v526
    %v528 = vpop.xlane.xlu0 %527
    %v529 = vmul.f32 %v447, %v447
    %v530 = vmul.f32 %v449, %v449
    %v531 = vmul.f32 %v518, %v518
    %v532 = vmul.f32 %v520, %v520
    %v533 = vadd.f32 %v529, %v530
    %v534 = vadd.f32 %v533, %v531
    %v535 = vadd.f32 %v534, %v532
    %536 = vadd.xlane.f32.xlu0 %v535
    %v537 = vpop.xlane.xlu0 %536
    %v538 = vmul.f32 %v528, 0.001953125
    %v539 = vmul.f32 %v537, 0.001953125
    %v540 = vmul.f32 %v538, %v538
    %v541 = vsub.f32 %v539, %v540
    %v542 = vmax.f32 %v541, 0.0
    %v543 = vadd.f32 %v542, 1e-05
    %v544 = vrsqrt.pop %v543
    %v545 = vmul.f32 %v522, %v544
    %v546 = vmul.f32 %v538, %v545
    %v547 = vsub.f32 %v523, %v546
    %549 = vset.pattern.permute.xlu0 0
    %550 = vperm.xlu0 %549, %v545
    %v551 = vpop.permute.xlu0 %550
    %v553 = vmul.f32 %v447, %v551
    %v554 = vmul.f32 %v449, %v551
    %v555 = vmul.f32 %v518, %v551
    %v556 = vmul.f32 %v520, %v551
    %558 = vset.pattern.permute.xlu0 0
    %559 = vperm.xlu0 %558, %v547
    %v560 = vpop.permute.xlu0 %559
    %v562 = vadd.f32 %v553, %v560
    %v563 = vadd.f32 %v554, %v560
    %v564 = vadd.f32 %v555, %v560
    %v565 = vadd.f32 %v556, %v560
    %v566 = vmax.f32 %v562, 0.0
    %v567 = vmax.f32 %v563, 0.0
    %v568 = vmax.f32 %v564, 0.0
    %v569 = vmax.f32 %v565, 0.0
    %v570 = vld [vmem:[%s6] sm:$0xff]
    %571 = vrot.lane.b32.xlu0 %v566, 17
    %v572 = vpop.permute.xlu0 %571
    %573 = vrot.lane.b32.xlu0 %v567, 17
    %v574 = vpop.permute.xlu0 %573
    %575 = vrot.lane.b32.xlu0 %v568, 17
    %v576 = vpop.permute.xlu0 %575
    %577 = vrot.lane.b32.xlu0 %v569, 17
    %v578 = vpop.permute.xlu0 %577
    %v579 = vsel %vm120, %v576, %v578
    %v580 = vsel %vm120, %v574, %v576
    %v581 = vsel %vm120, %v572, %v574
    %v582 = vsel %vm120, %v578, %v572
    %v583 = vmul.f32 %v582, %v128
    %v584 = vmul.f32 %v581, %v132
    %v585 = vmul.f32 %v580, %v136
    %v586 = vmul.f32 %v579, %v140
    %587 = vrot.lane.b32.xlu0 %v566, 16
    %v588 = vpop.permute.xlu0 %587
    %589 = vrot.lane.b32.xlu0 %v567, 16
    %v590 = vpop.permute.xlu0 %589
    %591 = vrot.lane.b32.xlu0 %v568, 16
    %v592 = vpop.permute.xlu0 %591
    %593 = vrot.lane.b32.xlu0 %v569, 16
    %v594 = vpop.permute.xlu0 %593
    %v595 = vsel %vm153, %v592, %v594
    %v596 = vsel %vm153, %v590, %v592
    %v597 = vsel %vm153, %v588, %v590
    %v598 = vsel %vm153, %v594, %v588
    %v599 = vmul.f32 %v598, %v161
    %v600 = vmul.f32 %v597, %v165
    %v601 = vmul.f32 %v596, %v169
    %v602 = vmul.f32 %v595, %v173
    %603 = vrot.lane.b32.xlu0 %v566, 15
    %v604 = vpop.permute.xlu0 %603
    %605 = vrot.lane.b32.xlu0 %v567, 15
    %v606 = vpop.permute.xlu0 %605
    %607 = vrot.lane.b32.xlu0 %v568, 15
    %v608 = vpop.permute.xlu0 %607
    %609 = vrot.lane.b32.xlu0 %v569, 15
    %v610 = vpop.permute.xlu0 %609
    %v611 = vsel %vm186, %v608, %v610
    %v612 = vsel %vm186, %v606, %v608
    %v613 = vsel %vm186, %v604, %v606
    %v614 = vsel %vm186, %v610, %v604
    %v615 = vmul.f32 %v614, %v194
    %v616 = vmul.f32 %v613, %v198
    %v617 = vmul.f32 %v612, %v202
    %v618 = vmul.f32 %v611, %v206
    %619 = vrot.lane.b32.xlu0 %v566, 1
    %v620 = vpop.permute.xlu0 %619
    %621 = vrot.lane.b32.xlu0 %v567, 1
    %v622 = vpop.permute.xlu0 %621
    %623 = vrot.lane.b32.xlu0 %v568, 1
    %v624 = vpop.permute.xlu0 %623
    %625 = vrot.lane.b32.xlu0 %v569, 1
    %v626 = vpop.permute.xlu0 %625
    %v627 = vsel %vm219, %v624, %v626
    %v628 = vsel %vm219, %v622, %v624
    %v629 = vsel %vm219, %v620, %v622
    %v630 = vsel %vm219, %v626, %v620
    %v631 = vmul.f32 %v630, %v227
    %v632 = vmul.f32 %v629, %v231
    %v633 = vmul.f32 %v628, %v235
    %v634 = vmul.f32 %v627, %v239
    %635 = vrot.lane.b32.xlu0 %v566, 127
    %v636 = vpop.permute.xlu0 %635
    %637 = vrot.lane.b32.xlu0 %v567, 127
    %v638 = vpop.permute.xlu0 %637
    %639 = vrot.lane.b32.xlu0 %v568, 127
    %v640 = vpop.permute.xlu0 %639
    %641 = vrot.lane.b32.xlu0 %v569, 127
    %v642 = vpop.permute.xlu0 %641
    %v643 = vsel %vm252, %v640, %v642
    %v644 = vsel %vm252, %v638, %v640
    %v645 = vsel %vm252, %v636, %v638
    %v646 = vsel %vm252, %v642, %v636
    %v647 = vmul.f32 %v645, %v260
    %v648 = vmul.f32 %v644, %v264
    %v649 = vmul.f32 %v643, %v268
    %v650 = vmul.f32 %v646, %v272
    %651 = vrot.lane.b32.xlu0 %v566, 113
    %v652 = vpop.permute.xlu0 %651
    %653 = vrot.lane.b32.xlu0 %v567, 113
    %v654 = vpop.permute.xlu0 %653
    %655 = vrot.lane.b32.xlu0 %v568, 113
    %v656 = vpop.permute.xlu0 %655
    %657 = vrot.lane.b32.xlu0 %v569, 113
    %v658 = vpop.permute.xlu0 %657
    %v659 = vsel %vm285, %v656, %v658
    %v660 = vsel %vm285, %v654, %v656
    %v661 = vsel %vm285, %v652, %v654
    %v662 = vsel %vm285, %v658, %v652
    %v663 = vmul.f32 %v661, %v293
    %v664 = vmul.f32 %v660, %v297
    %v665 = vmul.f32 %v659, %v301
    %v666 = vmul.f32 %v662, %v305
    %667 = vrot.lane.b32.xlu0 %v566, 112
    %v668 = vpop.permute.xlu0 %667
    %669 = vrot.lane.b32.xlu0 %v567, 112
    %v670 = vpop.permute.xlu0 %669
    %671 = vrot.lane.b32.xlu0 %v568, 112
    %v672 = vpop.permute.xlu0 %671
    %673 = vrot.lane.b32.xlu0 %v569, 112
    %v674 = vpop.permute.xlu0 %673
    %v675 = vsel %vm318, %v672, %v674
    %v676 = vsel %vm318, %v670, %v672
    %v677 = vsel %vm318, %v668, %v670
    %v678 = vsel %vm318, %v674, %v668
    %v679 = vmul.f32 %v677, %v326
    %v680 = vmul.f32 %v676, %v330
    %v681 = vmul.f32 %v675, %v334
    %v682 = vmul.f32 %v678, %v338
    %683 = vrot.lane.b32.xlu0 %v566, 111
    %v684 = vpop.permute.xlu0 %683
    %685 = vrot.lane.b32.xlu0 %v567, 111
    %v686 = vpop.permute.xlu0 %685
    %687 = vrot.lane.b32.xlu0 %v568, 111
    %v688 = vpop.permute.xlu0 %687
    %689 = vrot.lane.b32.xlu0 %v569, 111
    %v690 = vpop.permute.xlu0 %689
    %v691 = vsel %vm351, %v688, %v690
    %v692 = vsel %vm351, %v686, %v688
    %v693 = vsel %vm351, %v684, %v686
    %v694 = vsel %vm351, %v690, %v684
    %v695 = vmul.f32 %v693, %v359
    %v696 = vmul.f32 %v692, %v363
    %v697 = vmul.f32 %v691, %v367
    %v698 = vmul.f32 %v694, %v371
    %v700 = vsel %vm376, %v570, 0
    %702 = vmatprep.subr.mxu0 0.0
    %703 = vmatpush1.msra.mxu0 0.0
    %704 = vmatprep.subr.mxu0 0.0
    %705 = vmatpush1.msra.mxu0 0.0
    %706 = vmatprep.subr.mxu0 0.0
    %707 = vmatpush1.msra.mxu0 0.0
    %708 = vmatprep.subr.mxu0 0.0
    %709 = vmatpush1.msra.mxu0 0.0
    %710 = vmatprep.subr.mxu0 0.0
    %711 = vmatpush1.msra.mxu0 0.0
    %712 = vmatprep.subr.mxu0 0.0
    %713 = vmatpush1.msra.mxu0 0.0
    %714 = vmatprep.subr.mxu0 0.0
    %715 = vmatpush1.msra.mxu0 0.0
    %716 = vmatprep.subr.mxu0 %v696
    %717 = vmatpush1.msra.mxu0 %v695
    %718 = vmatprep.subr.mxu0 %v680
    %719 = vmatpush1.msra.mxu0 %v679
    %720 = vmatprep.subr.mxu0 %v664
    %721 = vmatpush1.msra.mxu0 %v663
    %722 = vmatprep.subr.mxu0 %v648
    %723 = vmatpush1.msra.mxu0 %v647
    %724 = vmatprep.subr.mxu0 %v567
    %725 = vmatpush1.msra.mxu0 %v566
    %726 = vmatprep.subr.mxu0 %v632
    %727 = vmatpush1.msra.mxu0 %v631
    %728 = vmatprep.subr.mxu0 %v616
    %729 = vmatpush1.msra.mxu0 %v615
    %730 = vmatprep.subr.mxu0 %v600
    %731 = vmatpush1.msra.mxu0 %v599
    %732 = vmatprep.subr.mxu0 %v584
    %733 = vmatpush1.msra.mxu0 %v583
    %734 = vmatprep.subr.mxu0 0.0
    %735 = vmatpush2.msra.mxu0 0.0
    %736 = vmatprep.subr.mxu0 0.0
    %737 = vmatpush2.msra.mxu0 0.0
    %738 = vmatprep.subr.mxu0 0.0
    %739 = vmatpush2.msra.mxu0 0.0
    %740 = vmatprep.subr.mxu0 0.0
    %741 = vmatpush2.msra.mxu0 0.0
    %742 = vmatprep.subr.mxu0 0.0
    %743 = vmatpush2.msra.mxu0 0.0
    %744 = vmatprep.subr.mxu0 0.0
    %745 = vmatpush2.msra.mxu0 0.0
    %746 = vmatprep.subr.mxu0 0.0
    %747 = vmatpush2.msra.mxu0 0.0
    %748 = vmatprep.subr.mxu0 0.0
    %749 = vmatpush2.msra.mxu0 0.0
    %750 = vmatprep.subr.mxu0 0.0
    %751 = vmatpush2.msra.mxu0 0.0
    %752 = vmatprep.subr.mxu0 0.0
    %753 = vmatpush2.msra.mxu0 0.0
    %754 = vmatprep.subr.mxu0 0.0
    %755 = vmatpush2.msra.mxu0 0.0
    %756 = vmatprep.subr.mxu0 0.0
    %757 = vmatpush2.msra.mxu0 0.0
    %758 = vmatprep.subr.mxu0 0.0
    %759 = vmatpush2.msra.mxu0 0.0
    %760 = vmatprep.subr.mxu0 0.0
    %761 = vmatpush2.msra.mxu0 0.0
    %762 = vmatprep.subr.mxu0 0.0
    %763 = vmatpush2.msra.mxu0 0.0
    %764 = vmatprep.subr.mxu0 0.0
    %765 = vmatpush2.msra.mxu0 0.0
    %766 = vmatprep.mubr.f32.mxu0 0.0
    %767 = vmatmul.mubr.f32.gmra.mxu0 %v700
    %v768 = vpop.f32.mrf.mxu0
    %v769 = vadd.f32 0.0, %v768
    %v770 = vpop.f32.mrf.mxu0
    %v771 = vadd.f32 0.0, %v770
    %772 = vdwg.mxu0
    %773 = vmatprep.subr.mxu0 0.0
    %774 = vmatpush1.msra.mxu0 0.0
    %775 = vmatprep.subr.mxu0 0.0
    %776 = vmatpush1.msra.mxu0 0.0
    %777 = vmatprep.subr.mxu0 0.0
    %778 = vmatpush1.msra.mxu0 0.0
    %779 = vmatprep.subr.mxu0 0.0
    %780 = vmatpush1.msra.mxu0 0.0
    %781 = vmatprep.subr.mxu0 0.0
    %782 = vmatpush1.msra.mxu0 0.0
    %783 = vmatprep.subr.mxu0 0.0
    %784 = vmatpush1.msra.mxu0 0.0
    %785 = vmatprep.subr.mxu0 0.0
    %786 = vmatpush1.msra.mxu0 0.0
    %787 = vmatprep.subr.mxu0 %v698
    %788 = vmatpush1.msra.mxu0 %v697
    %789 = vmatprep.subr.mxu0 %v682
    %790 = vmatpush1.msra.mxu0 %v681
    %791 = vmatprep.subr.mxu0 %v666
    %792 = vmatpush1.msra.mxu0 %v665
    %793 = vmatprep.subr.mxu0 %v650
    %794 = vmatpush1.msra.mxu0 %v649
    %795 = vmatprep.subr.mxu0 %v569
    %796 = vmatpush1.msra.mxu0 %v568
    %797 = vmatprep.subr.mxu0 %v634
    %798 = vmatpush1.msra.mxu0 %v633
    %799 = vmatprep.subr.mxu0 %v618
    %800 = vmatpush1.msra.mxu0 %v617
    %801 = vmatprep.subr.mxu0 %v602
    %802 = vmatpush1.msra.mxu0 %v601
    %803 = vmatprep.subr.mxu0 %v586
    %804 = vmatpush1.msra.mxu0 %v585
    %805 = vmatprep.subr.mxu0 0.0
    %806 = vmatpush2.msra.mxu0 0.0
    %807 = vmatprep.subr.mxu0 0.0
    %808 = vmatpush2.msra.mxu0 0.0
    %809 = vmatprep.subr.mxu0 0.0
    %810 = vmatpush2.msra.mxu0 0.0
    %811 = vmatprep.subr.mxu0 0.0
    %812 = vmatpush2.msra.mxu0 0.0
    %813 = vmatprep.subr.mxu0 0.0
    %814 = vmatpush2.msra.mxu0 0.0
    %815 = vmatprep.subr.mxu0 0.0
    %816 = vmatpush2.msra.mxu0 0.0
    %817 = vmatprep.subr.mxu0 0.0
    %818 = vmatpush2.msra.mxu0 0.0
    %819 = vmatprep.subr.mxu0 0.0
    %820 = vmatpush2.msra.mxu0 0.0
    %821 = vmatprep.subr.mxu0 0.0
    %822 = vmatpush2.msra.mxu0 0.0
    %823 = vmatprep.subr.mxu0 0.0
    %824 = vmatpush2.msra.mxu0 0.0
    %825 = vmatprep.subr.mxu0 0.0
    %826 = vmatpush2.msra.mxu0 0.0
    %827 = vmatprep.subr.mxu0 0.0
    %828 = vmatpush2.msra.mxu0 0.0
    %829 = vmatprep.subr.mxu0 0.0
    %830 = vmatpush2.msra.mxu0 0.0
    %831 = vmatprep.subr.mxu0 0.0
    %832 = vmatpush2.msra.mxu0 0.0
    %833 = vmatprep.subr.mxu0 0.0
    %834 = vmatpush2.msra.mxu0 0.0
    %835 = vmatprep.subr.mxu0 0.0
    %836 = vmatpush2.msra.mxu0 0.0
    %837 = vmatprep.mubr.f32.mxu0 0.0
    %838 = vmatmul.mubr.f32.gmra.mxu0 %v700
    %v839 = vpop.f32.mrf.mxu0
    %v840 = vadd.f32 0.0, %v839
    %v841 = vpop.f32.mrf.mxu0
    %v842 = vadd.f32 0.0, %v841
    %843 = vdwg.mxu0
    %v844 = vld [vmem:[%s7] sm:$0xff]
    %v845 = vld [vmem:[%s8] sm:$0xff]
    %v846 = vadd.f32 %v769, %v771
    %v847 = vadd.f32 %v846, %v840
    %v848 = vadd.f32 %v847, %v842
    %849 = vadd.xlane.f32.xlu0 %v848
    %v850 = vpop.xlane.xlu0 %849
    %v851 = vmul.f32 %v769, %v769
    %v852 = vmul.f32 %v771, %v771
    %v853 = vmul.f32 %v840, %v840
    %v854 = vmul.f32 %v842, %v842
    %v855 = vadd.f32 %v851, %v852
    %v856 = vadd.f32 %v855, %v853
    %v857 = vadd.f32 %v856, %v854
    %858 = vadd.xlane.f32.xlu0 %v857
    %v859 = vpop.xlane.xlu0 %858
    %v860 = vmul.f32 %v850, 0.001953125
    %v861 = vmul.f32 %v859, 0.001953125
    %v862 = vmul.f32 %v860, %v860
    %v863 = vsub.f32 %v861, %v862
    %v864 = vmax.f32 %v863, 0.0
    %v865 = vadd.f32 %v864, 1e-05
    %v866 = vrsqrt.pop %v865
    %v867 = vmul.f32 %v844, %v866
    %v868 = vmul.f32 %v860, %v867
    %v869 = vsub.f32 %v845, %v868
    %871 = vset.pattern.permute.xlu0 0
    %872 = vperm.xlu0 %871, %v867
    %v873 = vpop.permute.xlu0 %872
    %v875 = vmul.f32 %v769, %v873
    %v876 = vmul.f32 %v771, %v873
    %v877 = vmul.f32 %v840, %v873
    %v878 = vmul.f32 %v842, %v873
    %880 = vset.pattern.permute.xlu0 0
    %881 = vperm.xlu0 %880, %v869
    %v882 = vpop.permute.xlu0 %881
    %v884 = vadd.f32 %v875, %v882
    %v885 = vadd.f32 %v876, %v882
    %v886 = vadd.f32 %v877, %v882
    %v887 = vadd.f32 %v878, %v882
    %v888 = vmax.f32 %v884, 0.0
    %v889 = vmax.f32 %v885, 0.0
    %v890 = vmax.f32 %v886, 0.0
    %v891 = vmax.f32 %v887, 0.0
    %v892 = vld [vmem:[#allocation7] sm:$0xff]
    %v893 = vld [vmem:[%s1] sm:$0xff]
    %v894 = vld [vmem:[%s1 + $0x8] sm:$0xff]
    %vm895 = vcmask 130048
    %v897 = vsel %vm895, %v892, 0
    %899 = vmatprep.subr.mxu0 0.0
    %900 = vmatpush1.msra.mxu0 0.0
    %901 = vmatprep.subr.mxu0 0.0
    %902 = vmatpush1.msra.mxu0 0.0
    %903 = vmatprep.subr.mxu0 0.0
    %904 = vmatpush1.msra.mxu0 0.0
    %905 = vmatprep.subr.mxu0 0.0
    %906 = vmatpush1.msra.mxu0 0.0
    %907 = vmatprep.subr.mxu0 0.0
    %908 = vmatpush1.msra.mxu0 0.0
    %909 = vmatprep.subr.mxu0 0.0
    %910 = vmatpush1.msra.mxu0 0.0
    %911 = vmatprep.subr.mxu0 0.0
    %912 = vmatpush1.msra.mxu0 0.0
    %913 = vmatprep.subr.mxu0 0.0
    %914 = vmatpush1.msra.mxu0 0.0
    %915 = vmatprep.subr.mxu0 0.0
    %916 = vmatpush1.msra.mxu0 0.0
    %917 = vmatprep.subr.mxu0 0.0
    %918 = vmatpush1.msra.mxu0 0.0
    %919 = vmatprep.subr.mxu0 0.0
    %920 = vmatpush1.msra.mxu0 0.0
    %921 = vmatprep.subr.mxu0 0.0
    %922 = vmatpush1.msra.mxu0 0.0
    %923 = vmatprep.subr.mxu0 0.0
    %924 = vmatpush1.msra.mxu0 0.0
    %925 = vmatprep.subr.mxu0 0.0
    %926 = vmatpush1.msra.mxu0 0.0
    %927 = vmatprep.subr.mxu0 0.0
    %928 = vmatpush1.msra.mxu0 %v894
    %929 = vmatprep.subr.mxu0 0.0
    %930 = vmatpush1.msra.mxu0 %v893
    %931 = vmatprep.subr.mxu0 0.0
    %932 = vmatpush2.msra.mxu0 0.0
    %933 = vmatprep.subr.mxu0 0.0
    %934 = vmatpush2.msra.mxu0 0.0
    %935 = vmatprep.subr.mxu0 0.0
    %936 = vmatpush2.msra.mxu0 0.0
    %937 = vmatprep.subr.mxu0 0.0
    %938 = vmatpush2.msra.mxu0 0.0
    %939 = vmatprep.subr.mxu0 0.0
    %940 = vmatpush2.msra.mxu0 0.0
    %941 = vmatprep.subr.mxu0 0.0
    %942 = vmatpush2.msra.mxu0 0.0
    %943 = vmatprep.subr.mxu0 0.0
    %944 = vmatpush2.msra.mxu0 0.0
    %945 = vmatprep.subr.mxu0 0.0
    %946 = vmatpush2.msra.mxu0 0.0
    %947 = vmatprep.subr.mxu0 0.0
    %948 = vmatpush2.msra.mxu0 0.0
    %949 = vmatprep.subr.mxu0 0.0
    %950 = vmatpush2.msra.mxu0 0.0
    %951 = vmatprep.subr.mxu0 0.0
    %952 = vmatpush2.msra.mxu0 0.0
    %953 = vmatprep.subr.mxu0 0.0
    %954 = vmatpush2.msra.mxu0 0.0
    %955 = vmatprep.subr.mxu0 0.0
    %956 = vmatpush2.msra.mxu0 0.0
    %957 = vmatprep.subr.mxu0 0.0
    %958 = vmatpush2.msra.mxu0 0.0
    %959 = vmatprep.subr.mxu0 0.0
    %960 = vmatpush2.msra.mxu0 0.0
    %961 = vmatprep.subr.mxu0 0.0
    %962 = vmatpush2.msra.mxu0 0.0
    %963 = vmatprep.mubr.f32.mxu0 0.0
    %964 = vmatmul.mubr.f32.gmra.mxu0 %v897
    %v965 = vpop.f32.mrf.mxu0
    %v966 = vadd.f32 0.0, %v965
    %v967 = vpop.f32.mrf.mxu0
    %968 = vdwg.mxu0
    %v969 = vld [vmem:[%s11] sm:$0xff]
    %v971 = vcombine.high %v969, %v969
    %v973 = vunpack.c.l.s4 1983009808
    %v974 = vunpack.c.0.s8 %v973
    %v975 = vlaneseq
    %v976 = vshrl.u32 %v975, 7
    %v977 = vsub.s32 %v974, %v976
    %v978 = vrot.slane %v969, %v977
    %v980 = vunpack.c.l.s4 1983009808
    %v981 = vunpack.c.0.s8 %v980
    %v982 = vlaneseq
    %v983 = vshrl.u32 %v982, 7
    %v984 = vsub.s32 %v981, %v983
    %v985 = vrot.slane %v971, %v984
    %v986 = vcombine.high %v978, %v978
    %v987 = vcombine.high %v985, %v985
    %vm988 = vcmask 15360
    %v990 = vsel %vm988, %v966, 0
    %vm992 = vcmask 1041408
    %v993 = vsel %vm992, %v978, 0
    %v995 = vsel %vm992, %v986, 0
    %v997 = vsel %vm992, %v985, 0
    %v999 = vsel %vm992, %v987, 0
    %1001 = vmatprep.subr.mxu0 0.0
    %1002 = vmatpush1.msra.mxu0 0.0
    %1003 = vmatprep.subr.mxu0 0.0
    %1004 = vmatpush1.msra.mxu0 0.0
    %1005 = vmatprep.subr.mxu0 0.0
    %1006 = vmatpush1.msra.mxu0 0.0
    %1007 = vmatprep.subr.mxu0 0.0
    %1008 = vmatpush1.msra.mxu0 0.0
    %1009 = vmatprep.subr.mxu0 0.0
    %1010 = vmatpush1.msra.mxu0 0.0
    %1011 = vmatprep.subr.mxu0 0.0
    %1012 = vmatpush1.msra.mxu0 0.0
    %1013 = vmatprep.subr.mxu0 0.0
    %1014 = vmatpush1.msra.mxu0 0.0
    %1015 = vmatprep.subr.mxu0 0.0
    %1016 = vmatpush1.msra.mxu0 0.0
    %1017 = vmatprep.subr.mxu0 0.0
    %1018 = vmatpush1.msra.mxu0 0.0
    %1019 = vmatprep.subr.mxu0 0.0
    %1020 = vmatpush1.msra.mxu0 0.0
    %1021 = vmatprep.subr.mxu0 0.0
    %1022 = vmatpush1.msra.mxu0 0.0
    %1023 = vmatprep.subr.mxu0 0.0
    %1024 = vmatpush1.msra.mxu0 0.0
    %1025 = vmatprep.subr.mxu0 0.0
    %1026 = vmatpush1.msra.mxu0 0.0
    %1027 = vmatprep.subr.mxu0 0.0
    %1028 = vmatpush1.msra.mxu0 0.0
    %1029 = vmatprep.subr.mxu0 0.0
    %1030 = vmatpush1.msra.mxu0 0.0
    %1031 = vmatprep.subr.mxu0 %v995
    %1032 = vmatpush1.msra.mxu0 %v993
    %1033 = vmatprep.subr.mxu0 0.0
    %1034 = vmatpush2.msra.mxu0 0.0
    %1035 = vmatprep.subr.mxu0 0.0
    %1036 = vmatpush2.msra.mxu0 0.0
    %1037 = vmatprep.subr.mxu0 0.0
    %1038 = vmatpush2.msra.mxu0 0.0
    %1039 = vmatprep.subr.mxu0 0.0
    %1040 = vmatpush2.msra.mxu0 0.0
    %1041 = vmatprep.subr.mxu0 0.0
    %1042 = vmatpush2.msra.mxu0 0.0
    %1043 = vmatprep.subr.mxu0 0.0
    %1044 = vmatpush2.msra.mxu0 0.0
    %1045 = vmatprep.subr.mxu0 0.0
    %1046 = vmatpush2.msra.mxu0 0.0
    %1047 = vmatprep.subr.mxu0 0.0
    %1048 = vmatpush2.msra.mxu0 0.0
    %1049 = vmatprep.subr.mxu0 0.0
    %1050 = vmatpush2.msra.mxu0 0.0
    %1051 = vmatprep.subr.mxu0 0.0
    %1052 = vmatpush2.msra.mxu0 0.0
    %1053 = vmatprep.subr.mxu0 0.0
    %1054 = vmatpush2.msra.mxu0 0.0
    %1055 = vmatprep.subr.mxu0 0.0
    %1056 = vmatpush2.msra.mxu0 0.0
    %1057 = vmatprep.subr.mxu0 0.0
    %1058 = vmatpush2.msra.mxu0 0.0
    %1059 = vmatprep.subr.mxu0 0.0
    %1060 = vmatpush2.msra.mxu0 0.0
    %1061 = vmatprep.subr.mxu0 0.0
    %1062 = vmatpush2.msra.mxu0 0.0
    %1063 = vmatprep.subr.mxu0 0.0
    %1064 = vmatpush2.msra.mxu0 0.0
    %1065 = vmatprep.mubr.f32.mxu0 0.0
    %1066 = vmatmul.mubr.f32.gmra.mxu0 %v990
    %v1067 = vpop.f32.mrf.mxu0
    %v1068 = vadd.f32 0.0, %v1067
    %v1069 = vpop.f32.mrf.mxu0
    %v1070 = vadd.f32 0.0, %v1069
    %1071 = vdwg.mxu0
    %1072 = vmatprep.subr.mxu0 0.0
    %1073 = vmatpush1.msra.mxu0 0.0
    %1074 = vmatprep.subr.mxu0 0.0
    %1075 = vmatpush1.msra.mxu0 0.0
    %1076 = vmatprep.subr.mxu0 0.0
    %1077 = vmatpush1.msra.mxu0 0.0
    %1078 = vmatprep.subr.mxu0 0.0
    %1079 = vmatpush1.msra.mxu0 0.0
    %1080 = vmatprep.subr.mxu0 0.0
    %1081 = vmatpush1.msra.mxu0 0.0
    %1082 = vmatprep.subr.mxu0 0.0
    %1083 = vmatpush1.msra.mxu0 0.0
    %1084 = vmatprep.subr.mxu0 0.0
    %1085 = vmatpush1.msra.mxu0 0.0
    %1086 = vmatprep.subr.mxu0 0.0
    %1087 = vmatpush1.msra.mxu0 0.0
    %1088 = vmatprep.subr.mxu0 0.0
    %1089 = vmatpush1.msra.mxu0 0.0
    %1090 = vmatprep.subr.mxu0 0.0
    %1091 = vmatpush1.msra.mxu0 0.0
    %1092 = vmatprep.subr.mxu0 0.0
    %1093 = vmatpush1.msra.mxu0 0.0
    %1094 = vmatprep.subr.mxu0 0.0
    %1095 = vmatpush1.msra.mxu0 0.0
    %1096 = vmatprep.subr.mxu0 0.0
    %1097 = vmatpush1.msra.mxu0 0.0
    %1098 = vmatprep.subr.mxu0 0.0
    %1099 = vmatpush1.msra.mxu0 0.0
    %1100 = vmatprep.subr.mxu0 0.0
    %1101 = vmatpush1.msra.mxu0 0.0
    %1102 = vmatprep.subr.mxu0 %v999
    %1103 = vmatpush1.msra.mxu0 %v997
    %1104 = vmatprep.subr.mxu0 0.0
    %1105 = vmatpush2.msra.mxu0 0.0
    %1106 = vmatprep.subr.mxu0 0.0
    %1107 = vmatpush2.msra.mxu0 0.0
    %1108 = vmatprep.subr.mxu0 0.0
    %1109 = vmatpush2.msra.mxu0 0.0
    %1110 = vmatprep.subr.mxu0 0.0
    %1111 = vmatpush2.msra.mxu0 0.0
    %1112 = vmatprep.subr.mxu0 0.0
    %1113 = vmatpush2.msra.mxu0 0.0
    %1114 = vmatprep.subr.mxu0 0.0
    %1115 = vmatpush2.msra.mxu0 0.0
    %1116 = vmatprep.subr.mxu0 0.0
    %1117 = vmatpush2.msra.mxu0 0.0
    %1118 = vmatprep.subr.mxu0 0.0
    %1119 = vmatpush2.msra.mxu0 0.0
    %1120 = vmatprep.subr.mxu0 0.0
    %1121 = vmatpush2.msra.mxu0 0.0
    %1122 = vmatprep.subr.mxu0 0.0
    %1123 = vmatpush2.msra.mxu0 0.0
    %1124 = vmatprep.subr.mxu0 0.0
    %1125 = vmatpush2.msra.mxu0 0.0
    %1126 = vmatprep.subr.mxu0 0.0
    %1127 = vmatpush2.msra.mxu0 0.0
    %1128 = vmatprep.subr.mxu0 0.0
    %1129 = vmatpush2.msra.mxu0 0.0
    %1130 = vmatprep.subr.mxu0 0.0
    %1131 = vmatpush2.msra.mxu0 0.0
    %1132 = vmatprep.subr.mxu0 0.0
    %1133 = vmatpush2.msra.mxu0 0.0
    %1134 = vmatprep.subr.mxu0 0.0
    %1135 = vmatpush2.msra.mxu0 0.0
    %1136 = vmatprep.mubr.f32.mxu0 0.0
    %1137 = vmatmul.mubr.f32.gmra.mxu0 %v990
    %v1138 = vpop.f32.mrf.mxu0
    %v1139 = vadd.f32 0.0, %v1138
    %v1140 = vpop.f32.mrf.mxu0
    %v1141 = vadd.f32 0.0, %v1140
    %1142 = vdwg.mxu0
    %v1143 = vadd.f32 %v888, %v1068
    %v1144 = vadd.f32 %v889, %v1070
    %v1145 = vadd.f32 %v890, %v1139
    %v1146 = vadd.f32 %v891, %v1141
    %v1147 = vld [vmem:[%s10] sm:$0xff]
    %1149 = vset.pattern.permute.xlu0 0
    %1150 = vperm.xlu0 %1149, %v1147
    %v1151 = vpop.permute.xlu0 %1150
    %v1153 = vadd.f32 %v1143, %v1151
    %v1154 = vadd.f32 %v1144, %v1151
    %v1155 = vadd.f32 %v1145, %v1151
    %v1156 = vadd.f32 %v1146, %v1151
    %1157 = vst [vmem:[#allocation10] sm:$0xff] %v1153
    %1158 = vst [vmem:[#allocation10 + $0x8] sm:$0xff] %v1154
    %1159 = vst [vmem:[#allocation10 + $0x10] sm:$0xff] %v1155
    %1160 = vst [vmem:[#allocation10 + $0x18] sm:$0xff] %v1156
    %1161 = vrot.lane.b32.xlu0 %v1153, 127
    %v1162 = vpop.permute.xlu0 %1161
    %1163 = vrot.lane.b32.xlu0 %v1154, 127
    %v1164 = vpop.permute.xlu0 %1163
    %1165 = vrot.lane.b32.xlu0 %v1155, 127
    %v1166 = vpop.permute.xlu0 %1165
    %1167 = vrot.lane.b32.xlu0 %v1156, 127
    %v1168 = vpop.permute.xlu0 %1167
    %v1169 = vsel %vm252, %v1166, %v1168
    %v1170 = vsel %vm252, %v1164, %v1166
    %v1171 = vsel %vm252, %v1162, %v1164
    %v1172 = vsel %vm252, %v1168, %v1162
    %v1173 = vmax.f32 %v1153, %v1171
    %v1174 = vmax.f32 %v1154, %v1170
    %v1175 = vmax.f32 %v1155, %v1169
    %v1176 = vmax.f32 %v1156, %v1172
    %1177 = vrot.lane.b32.xlu0 %v1173, 112
    %v1178 = vpop.permute.xlu0 %1177
    %1179 = vrot.lane.b32.xlu0 %v1174, 112
    %v1180 = vpop.permute.xlu0 %1179
    %1181 = vrot.lane.b32.xlu0 %v1175, 112
    %v1182 = vpop.permute.xlu0 %1181
    %1183 = vrot.lane.b32.xlu0 %v1176, 112
    %v1184 = vpop.permute.xlu0 %1183
    %v1185 = vsel %vm318, %v1182, %v1184
    %v1186 = vsel %vm318, %v1180, %v1182
    %v1187 = vsel %vm318, %v1178, %v1180
    %v1188 = vsel %vm318, %v1184, %v1178
    %v1189 = vmax.f32 %v1173, %v1187
    %v1190 = vmax.f32 %v1174, %v1186
    %v1191 = vmax.f32 %v1175, %v1185
    %v1192 = vmax.f32 %v1176, %v1188
    %v1193 = vld [vmem:[#allocation8] sm:$0xff]
    %v1194 = vld [vmem:[#allocation8 + $0x8] sm:$0xff]
    %v1195 = vld [vmem:[#allocation8 + $0x10] sm:$0xff]
    %v1196 = vld [vmem:[#allocation8 + $0x18] sm:$0xff]
    %v1197 = vld [vmem:[#allocation8 + $0x20] sm:$0xff]
    %v1198 = vld [vmem:[#allocation8 + $0x28] sm:$0xff]
    %v1199 = vld [vmem:[#allocation8 + $0x30] sm:$0xff]
    %v1200 = vld [vmem:[#allocation8 + $0x38] sm:$0xff]
    %v1201 = vld [vmem:[#allocation8 + $0x40] sm:$0xff]
    %v1202 = vld [vmem:[#allocation8 + $0x48] sm:$0xff]
    %v1203 = vld [vmem:[#allocation8 + $0x50] sm:$0xff]
    %v1204 = vld [vmem:[#allocation8 + $0x58] sm:$0xff]
    %v1205 = vld [vmem:[#allocation8 + $0x60] sm:$0xff]
    %v1206 = vld [vmem:[#allocation8 + $0x68] sm:$0xff]
    %v1207 = vld [vmem:[#allocation8 + $0x70] sm:$0xff]
    %v1208 = vld [vmem:[#allocation8 + $0x78] sm:$0xff]
    %v1209 = vld [vmem:[#allocation8 + $0x80] sm:$0xff]
    %v1210 = vld [vmem:[#allocation8 + $0x88] sm:$0xff]
    %v1211 = vld [vmem:[#allocation8 + $0x90] sm:$0xff]
    %v1212 = vld [vmem:[#allocation8 + $0x98] sm:$0xff]
    %v1213 = vld [vmem:[#allocation8 + $0xa0] sm:$0xff]
    %v1214 = vld [vmem:[#allocation8 + $0xa8] sm:$0xff]
    %v1215 = vld [vmem:[#allocation8 + $0xb0] sm:$0xff]
    %v1216 = vld [vmem:[#allocation8 + $0xb8] sm:$0xff]
    %v1217 = vld [vmem:[#allocation8 + $0xc0] sm:$0xff]
    %v1218 = vld [vmem:[#allocation8 + $0xc8] sm:$0xff]
    %v1219 = vld [vmem:[#allocation8 + $0xd0] sm:$0xff]
    %v1220 = vld [vmem:[#allocation8 + $0xd8] sm:$0xff]
    %v1221 = vld [vmem:[#allocation8 + $0xe0] sm:$0xff]
    %v1222 = vld [vmem:[#allocation8 + $0xe8] sm:$0xff]
    %v1223 = vld [vmem:[#allocation8 + $0xf0] sm:$0xff]
    %v1224 = vld [vmem:[#allocation8 + $0xf8] sm:$0xff]
    %v1225 = vld [vmem:[#allocation8 + $0x100] sm:$0xff]
    %v1226 = vld [vmem:[#allocation8 + $0x108] sm:$0xff]
    %v1227 = vld [vmem:[#allocation8 + $0x110] sm:$0xff]
    %v1228 = vld [vmem:[#allocation8 + $0x118] sm:$0xff]
    %v1229 = vld [vmem:[#allocation8 + $0x120] sm:$0xff]
    %v1230 = vld [vmem:[#allocation8 + $0x128] sm:$0xff]
    %v1231 = vld [vmem:[#allocation8 + $0x130] sm:$0xff]
    %v1232 = vld [vmem:[#allocation8 + $0x138] sm:$0xff]
    %v1233 = vld [vmem:[#allocation8 + $0x140] sm:$0xff]
    %v1234 = vld [vmem:[#allocation8 + $0x148] sm:$0xff]
    %v1235 = vld [vmem:[#allocation8 + $0x150] sm:$0xff]
    %v1236 = vld [vmem:[#allocation8 + $0x158] sm:$0xff]
    %v1237 = vld [vmem:[#allocation8 + $0x160] sm:$0xff]
    %v1238 = vld [vmem:[#allocation8 + $0x168] sm:$0xff]
    %v1239 = vld [vmem:[#allocation8 + $0x170] sm:$0xff]
    %v1240 = vld [vmem:[#allocation8 + $0x178] sm:$0xff]
    %v1241 = vld [vmem:[#allocation8 + $0x180] sm:$0xff]
    %v1242 = vld [vmem:[#allocation8 + $0x188] sm:$0xff]
    %v1243 = vld [vmem:[#allocation8 + $0x190] sm:$0xff]
    %v1244 = vld [vmem:[#allocation8 + $0x198] sm:$0xff]
    %v1245 = vld [vmem:[#allocation8 + $0x1a0] sm:$0xff]
    %v1246 = vld [vmem:[#allocation8 + $0x1a8] sm:$0xff]
    %v1247 = vld [vmem:[#allocation8 + $0x1b0] sm:$0xff]
    %v1248 = vld [vmem:[#allocation8 + $0x1b8] sm:$0xff]
    %v1249 = vld [vmem:[#allocation8 + $0x1c0] sm:$0xff]
    %v1250 = vld [vmem:[#allocation8 + $0x1c8] sm:$0xff]
    %v1251 = vld [vmem:[#allocation8 + $0x1d0] sm:$0xff]
    %v1252 = vld [vmem:[#allocation8 + $0x1d8] sm:$0xff]
    %v1253 = vld [vmem:[#allocation8 + $0x1e0] sm:$0xff]
    %v1254 = vld [vmem:[#allocation8 + $0x1e8] sm:$0xff]
    %v1255 = vld [vmem:[#allocation8 + $0x1f0] sm:$0xff]
    %v1256 = vld [vmem:[#allocation8 + $0x1f8] sm:$0xff]
    %1257 = vmatprep.subr.mxu0 0.0
    %1258 = vmatpush1.msra.mxu0 %v1208
    %1259 = vmatprep.subr.mxu0 0.0
    %1260 = vmatpush1.msra.mxu0 %v1207
    %1261 = vmatprep.subr.mxu0 0.0
    %1262 = vmatpush1.msra.mxu0 %v1206
    %1263 = vmatprep.subr.mxu0 0.0
    %1264 = vmatpush1.msra.mxu0 %v1205
    %1265 = vmatprep.subr.mxu0 0.0
    %1266 = vmatpush1.msra.mxu0 %v1204
    %1267 = vmatprep.subr.mxu0 0.0
    %1268 = vmatpush1.msra.mxu0 %v1203
    %1269 = vmatprep.subr.mxu0 0.0
    %1270 = vmatpush1.msra.mxu0 %v1202
    %1271 = vmatprep.subr.mxu0 0.0
    %1272 = vmatpush1.msra.mxu0 %v1201
    %1273 = vmatprep.subr.mxu0 0.0
    %1274 = vmatpush1.msra.mxu0 %v1200
    %1275 = vmatprep.subr.mxu0 0.0
    %1276 = vmatpush1.msra.mxu0 %v1199
    %1277 = vmatprep.subr.mxu0 0.0
    %1278 = vmatpush1.msra.mxu0 %v1198
    %1279 = vmatprep.subr.mxu0 0.0
    %1280 = vmatpush1.msra.mxu0 %v1197
    %1281 = vmatprep.subr.mxu0 0.0
    %1282 = vmatpush1.msra.mxu0 %v1196
    %1283 = vmatprep.subr.mxu0 0.0
    %1284 = vmatpush1.msra.mxu0 %v1195
    %1285 = vmatprep.subr.mxu0 0.0
    %1286 = vmatpush1.msra.mxu0 %v1194
    %1287 = vmatprep.subr.mxu0 0.0
    %1288 = vmatpush1.msra.mxu0 %v1193
    %1289 = vmatprep.subr.mxu0 0.0
    %1290 = vmatpush2.msra.mxu0 %v1224
    %1291 = vmatprep.subr.mxu0 0.0
    %1292 = vmatpush2.msra.mxu0 %v1223
    %1293 = vmatprep.subr.mxu0 0.0
    %1294 = vmatpush2.msra.mxu0 %v1222
    %1295 = vmatprep.subr.mxu0 0.0
    %1296 = vmatpush2.msra.mxu0 %v1221
    %1297 = vmatprep.subr.mxu0 0.0
    %1298 = vmatpush2.msra.mxu0 %v1220
    %1299 = vmatprep.subr.mxu0 0.0
    %1300 = vmatpush2.msra.mxu0 %v1219
    %1301 = vmatprep.subr.mxu0 0.0
    %1302 = vmatpush2.msra.mxu0 %v1218
    %1303 = vmatprep.subr.mxu0 0.0
    %1304 = vmatpush2.msra.mxu0 %v1217
    %1305 = vmatprep.subr.mxu0 0.0
    %1306 = vmatpush2.msra.mxu0 %v1216
    %1307 = vmatprep.subr.mxu0 0.0
    %1308 = vmatpush2.msra.mxu0 %v1215
    %1309 = vmatprep.subr.mxu0 0.0
    %1310 = vmatpush2.msra.mxu0 %v1214
    %1311 = vmatprep.subr.mxu0 0.0
    %1312 = vmatpush2.msra.mxu0 %v1213
    %1313 = vmatprep.subr.mxu0 0.0
    %1314 = vmatpush2.msra.mxu0 %v1212
    %1315 = vmatprep.subr.mxu0 0.0
    %1316 = vmatpush2.msra.mxu0 %v1211
    %1317 = vmatprep.subr.mxu0 0.0
    %1318 = vmatpush2.msra.mxu0 %v1210
    %1319 = vmatprep.subr.mxu0 0.0
    %1320 = vmatpush2.msra.mxu0 %v1209
    %1321 = vmatprep.mubr.f32.mxu0 %v1190
    %1322 = vmatmul.mubr.f32.gmra.mxu0 %v1189
    %v1323 = vpop.f32.mrf.mxu0
    %v1324 = vadd.f32 0.0, %v1323
    %v1325 = vpop.f32.mrf.mxu0
    %1326 = vdwg.mxu0
    %1327 = vmatprep.subr.mxu0 0.0
    %1328 = vmatpush1.msra.mxu0 %v1240
    %1329 = vmatprep.subr.mxu0 0.0
    %1330 = vmatpush1.msra.mxu0 %v1239
    %1331 = vmatprep.subr.mxu0 0.0
    %1332 = vmatpush1.msra.mxu0 %v1238
    %1333 = vmatprep.subr.mxu0 0.0
    %1334 = vmatpush1.msra.mxu0 %v1237
    %1335 = vmatprep.subr.mxu0 0.0
    %1336 = vmatpush1.msra.mxu0 %v1236
    %1337 = vmatprep.subr.mxu0 0.0
    %1338 = vmatpush1.msra.mxu0 %v1235
    %1339 = vmatprep.subr.mxu0 0.0
    %1340 = vmatpush1.msra.mxu0 %v1234
    %1341 = vmatprep.subr.mxu0 0.0
    %1342 = vmatpush1.msra.mxu0 %v1233
    %1343 = vmatprep.subr.mxu0 0.0
    %1344 = vmatpush1.msra.mxu0 %v1232
    %1345 = vmatprep.subr.mxu0 0.0
    %1346 = vmatpush1.msra.mxu0 %v1231
    %1347 = vmatprep.subr.mxu0 0.0
    %1348 = vmatpush1.msra.mxu0 %v1230
    %1349 = vmatprep.subr.mxu0 0.0
    %1350 = vmatpush1.msra.mxu0 %v1229
    %1351 = vmatprep.subr.mxu0 0.0
    %1352 = vmatpush1.msra.mxu0 %v1228
    %1353 = vmatprep.subr.mxu0 0.0
    %1354 = vmatpush1.msra.mxu0 %v1227
    %1355 = vmatprep.subr.mxu0 0.0
    %1356 = vmatpush1.msra.mxu0 %v1226
    %1357 = vmatprep.subr.mxu0 0.0
    %1358 = vmatpush1.msra.mxu0 %v1225
    %1359 = vmatprep.subr.mxu0 0.0
    %1360 = vmatpush2.msra.mxu0 %v1256
    %1361 = vmatprep.subr.mxu0 0.0
    %1362 = vmatpush2.msra.mxu0 %v1255
    %1363 = vmatprep.subr.mxu0 0.0
    %1364 = vmatpush2.msra.mxu0 %v1254
    %1365 = vmatprep.subr.mxu0 0.0
    %1366 = vmatpush2.msra.mxu0 %v1253
    %1367 = vmatprep.subr.mxu0 0.0
    %1368 = vmatpush2.msra.mxu0 %v1252
    %1369 = vmatprep.subr.mxu0 0.0
    %1370 = vmatpush2.msra.mxu0 %v1251
    %1371 = vmatprep.subr.mxu0 0.0
    %1372 = vmatpush2.msra.mxu0 %v1250
    %1373 = vmatprep.subr.mxu0 0.0
    %1374 = vmatpush2.msra.mxu0 %v1249
    %1375 = vmatprep.subr.mxu0 0.0
    %1376 = vmatpush2.msra.mxu0 %v1248
    %1377 = vmatprep.subr.mxu0 0.0
    %1378 = vmatpush2.msra.mxu0 %v1247
    %1379 = vmatprep.subr.mxu0 0.0
    %1380 = vmatpush2.msra.mxu0 %v1246
    %1381 = vmatprep.subr.mxu0 0.0
    %1382 = vmatpush2.msra.mxu0 %v1245
    %1383 = vmatprep.subr.mxu0 0.0
    %1384 = vmatpush2.msra.mxu0 %v1244
    %1385 = vmatprep.subr.mxu0 0.0
    %1386 = vmatpush2.msra.mxu0 %v1243
    %1387 = vmatprep.subr.mxu0 0.0
    %1388 = vmatpush2.msra.mxu0 %v1242
    %1389 = vmatprep.subr.mxu0 0.0
    %1390 = vmatpush2.msra.mxu0 %v1241
    %1391 = vmatprep.mubr.f32.mxu0 %v1192
    %1392 = vmatmul.mubr.f32.gmra.mxu0 %v1191
    %v1393 = vpop.f32.mrf.mxu0
    %v1394 = vadd.f32 %v1324, %v1393
    %v1395 = vpop.f32.mrf.mxu0
    %1396 = vdwg.mxu0
    %1397 = vst [vmem:[#allocation11] sm:$0xff] %v1394
    // Predicated region
    $region70: #{tpu_custom_call.1} parent=1 // pred_check
      _
    $region71: #{tpu_custom_call.1} parent=1 // pred_check_branch
      %1399 = sbr.rel (0) target = $region73
    $region72: #{tpu_custom_call.1} parent=1 // pred_region
      %s1401 = ssub.s32 512, 512
      %1402 = vsyncadd [#allocation4], %s1401
      %s1404 = sshll.u32 [#allocation10], 4
      %s1405 = int_to_ptr.vmem [resolvable:$true] %s1404
      %1407 = dma.vmem_to_hbm [thread:$0]  %s1405, 512, %s13, [#allocation4]
    $region73: #{tpu_custom_call.1} parent=1 // pred_fallthru
      _
    // Predicated region
    $region74: #{tpu_custom_call.1} parent=1 // pred_check
      _
    $region75: #{tpu_custom_call.1} parent=1 // pred_check_branch
      %1409 = sbr.rel (0) target = $region77
    $region76: #{tpu_custom_call.1} parent=1 // pred_region
      %s1411 = ssub.s32 128, 128
      %1412 = vsyncadd [#allocation12], %s1411
      %s1414 = sshll.u32 [#allocation11], 4
      %s1415 = int_to_ptr.vmem [resolvable:$true] %s1414
      %1417 = dma.vmem_to_hbm [thread:$0]  %s1415, 128, %s14, [#allocation12]
    $region77: #{tpu_custom_call.1} parent=1 // pred_fallthru
      _
    // Predicated region
    $region78: #{tpu_custom_call.1} parent=1 // pred_check
      _
    $region79: #{tpu_custom_call.1} parent=1 // pred_check_branch
      %1419 = sbr.rel (0) target = $region81
    $region80: #{tpu_custom_call.1} parent=1 // pred_region
      %1420 = dma.done [#allocation4], 512
    $region81: #{tpu_custom_call.1} parent=1 // pred_fallthru
      _
    // Predicated region
    $region82: #{tpu_custom_call.1} parent=1 // pred_check
      _
    $region83: #{tpu_custom_call.1} parent=1 // pred_check_branch
      %1422 = sbr.rel (0) target = $region85
    $region84: #{tpu_custom_call.1} parent=1 // pred_region
      %1423 = dma.done [#allocation12], 128
    $region85: #{tpu_custom_call.1} parent=1 // pred_fallthru
      _
    %1424 = vsyncpa [#allocation3], 1
    %1425 = vsyncpa [#allocation6], 1
    %1426 = vsyncpa [#allocation9], 1
    %1427 = vsyncpa [#allocation4], 1
    %1428 = vsyncpa [#allocation12], 1

</llo_original>
